<compile_context>
chip_gen: v6e
topology: v6e:2x2x1
jax: 0.10.0
libtpu: 0.0.40
codegen_flags: <defaults>
</compile_context>

<pallas_src>
import functools

import jax
import jax.numpy as jnp
from jax import lax
from jax.experimental import pallas as pl
from jax.experimental.pallas import tpu as pltpu

NEG = -1.0e30        # finite "minus infinity" sentinel (real cosines live in [-1, 1])
LANE = 128


def _round_up(v, m):
    return (v + m - 1) // m * m


def _hardsigmoid(v):
    # matches F.hardsigmoid: clamp(x/6 + 0.5, 0, 1)
    return jnp.clip(v * (1.0 / 6.0) + 0.5, 0.0, 1.0)


def _recip(v):
    # EUP approximate reciprocal + one Newton-Raphson refinement (keeps the long-latency
    # f32 divide off the VPU). If v == 0 (hardsigmoid saturated) this yields NaN instead
    # of Inf; the PyTorch loss is non-finite there anyway.
    r = pl.reciprocal(v, approx=True)
    return r * (2.0 - v * r)


def _merge_topk(run_ref, chunk, k):
    """Merge one cohort chunk (R, tile_N) into the running per-row top-k buffer (R, k).

    Exact streaming top-k: top-k(union) is contained in union(top-k so far, chunk).
    k fully-unrolled extraction passes, each one XLU max over the chunk and one over
    the (tiny) carry buffer; all ties with the current max are masked at once.
    """
    r = run_ref[...]          # (R, k) running candidates (value copy)
    m = chunk                 # (R, tile_N) current chunk
    for i in range(k):        # static trip count
        cm = jnp.max(m, axis=-1, keepdims=True)
        cr = jnp.max(r, axis=-1, keepdims=True)
        cur = jnp.maximum(cm, cr)
        run_ref[:, i:i + 1] = cur
        m = jnp.where(m == cur, NEG, m)
        r = jnp.where(r == cur, NEG, r)


def _mean_std_from_topk(run_ref, k):
    """Two-pass mean / unbiased std over the (R, k) top-k buffer (no ss cancellation)."""
    v = run_ref[...]
    mean = jnp.sum(v, axis=-1, keepdims=True) * (1.0 / float(k))
    d = v - mean
    var = jnp.sum(d * d, axis=-1, keepdims=True) * (1.0 / float(k - 1))
    return mean, jnp.sqrt(var)


def snorm_angleproto_kernel(params_ref, x_ref, cos_ref, o_ref, run_a_ref, run_p_ref,
                            *, k, mxu_bf16):
    step = pl.program_id(0)
    last = pl.num_programs(0) - 1
    P, B, _ = x_ref.shape
    eps = 1e-8

    @pl.when(step == 0)
    def _init():
        run_a_ref[...] = jnp.full(run_a_ref.shape, NEG, run_a_ref.dtype)
        run_p_ref[...] = jnp.full(run_p_ref.shape, NEG, run_p_ref.dtype)

    # Cohort chunk in (P, B, tile_N) layout -> leading-axis squeezes (no strided gathers).
    ca = cos_ref[1]
    for p in range(2, P):
        ca = ca + cos_ref[p]
    cosine_anchor = ca * (1.0 / float(P - 1))             # (B, tile_N)
    cosine_positive = cos_ref[0]                          # (B, tile_N)

    # Streaming top-k merge; anchor / positive kept separate (no (2B, N) concat copy).
    _merge_topk(run_a_ref, cosine_anchor, k)
    _merge_topk(run_p_ref, cosine_positive, k)

    @pl.when(step == last)
    def _finalize():
        w, b = params_ref[0], params_ref[1]
        w2, w3 = params_ref[2], params_ref[3]
        b2, b3 = params_ref[4], params_ref[5]

        # out_anchor = mean(x[:, 1:, :], 1); out_positive = x[:, 0, :]
        anc = x_ref[1]
        for p in range(2, P):
            anc = anc + x_ref[p]
        out_anchor = anc * (1.0 / float(P - 1))           # (B, D_pad)
        out_positive = x_ref[0]                           # (B, D_pad)

        # unit-normalize with rsqrt (EUP) instead of sqrt + divide
        an = out_anchor * lax.rsqrt(jnp.maximum(
            jnp.sum(out_anchor * out_anchor, axis=-1, keepdims=True), eps * eps))
        pn = out_positive * lax.rsqrt(jnp.maximum(
            jnp.sum(out_positive * out_positive, axis=-1, keepdims=True), eps * eps))

        m1, s1 = _mean_std_from_topk(run_a_ref, k)        # (B,1) anchor stats -> column j
        m2, s2 = _mean_std_from_topk(run_p_ref, k)        # (B,1) positive stats -> row i
        m1h = _hardsigmoid(m1 * w2 + w3)
        m2h = _hardsigmoid(m2 * w2 + w3)
        inv_s1 = _recip(_hardsigmoid(s1 * b2 + b3))
        inv_s2 = _recip(_hardsigmoid(s2 * b2 + b3))

        # cosine-similarity matrix out_dot[i, j] = <pn[i], an[j]>  (bf16 MXU optional)
        if mxu_bf16:
            lhs, rhs = pn.astype(jnp.bfloat16), an.astype(jnp.bfloat16)
        else:
            lhs, rhs = pn, an
        nt = (((1,), (1,)), ((), ()))
        out_dot = lax.dot_general(lhs, rhs, nt, preferred_element_type=jnp.float32)

        # logits = 0.5*w*[(out_dot - M1)*INV_S1 + (out_dot - m2)*inv_s2] + b
        #        = out_dot * SCALE - SHIFT, with rank-2/3 SCALE/SHIFT built by one K=2
        # and one K=3 NT matmul (the MXU does the (B,1)->column "transpose"; small-K
        # matmuls are pipeline-latency bound so they stay f32 — bf16 buys nothing here).
        # inv_s1 cannot be folded into `an` because the row-stat term needs the
        # unscaled out_dot.
        half_w = 0.5 * w
        col2 = lax.broadcasted_iota(jnp.int32, (B, 2), 1)
        col3 = lax.broadcasted_iota(jnp.int32, (B, 3), 1)
        scale_lhs = jnp.where(col2 == 0, half_w, half_w * inv_s2)           # (B,2)
        scale_rhs = jnp.where(col2 == 0, inv_s1, 1.0)                       # (B,2)
        shift_lhs = (jnp.where(col3 == 0, half_w, 0.0)
                     + jnp.where(col3 == 1, half_w * (m2h * inv_s2), 0.0)
                     + jnp.where(col3 == 2, -b, 0.0))                       # (B,3)
        shift_rhs = jnp.where(col3 == 0, m1h * inv_s1, 1.0)                 # (B,3)
        scale_b = lax.dot_general(scale_lhs, scale_rhs, nt,
                                  preferred_element_type=jnp.float32)       # (B,B)
        shift_b = lax.dot_general(shift_lhs, shift_rhs, nt,
                                  preferred_element_type=jnp.float32)       # (B,B)

        logits = out_dot * scale_b - shift_b                                # (B,B)

        # CrossEntropy with label = arange(B): loss_i = logsumexp(row_i) - logits[i, i]
        rmax = jnp.max(logits, axis=-1, keepdims=True)
        lse = rmax + jnp.log(jnp.sum(jnp.exp(logits - rmax), axis=-1, keepdims=True))

        # Diagonal recomputed from the f32 embeddings (no iota/eye mask, no gather);
        # on the diagonal j == i, so the (B,1) column-layout stats apply as-is.
        dot_ii = jnp.sum(pn * an, axis=-1, keepdims=True)                   # (B,1)
        diag = half_w * ((dot_ii - m1h) * inv_s1 + (dot_ii - m2h) * inv_s2) + b

        per_row = lse - diag                                                # (B,1)
        o_ref[...] = jnp.sum(per_row, axis=0, keepdims=True) * (1.0 / float(B))


def snorm_angleproto_loss(x, cosine, params, k, *, mxu_bf16=False, chunk_cols=None):
    """x: (B, P, D) f32, cosine: (B, P, N) f32, params: (6,) f32 [w, b, w2, w3, b2, b3],
    k: top-k size (= cohort_size + 1). chunk_cols optionally forces the cohort chunk."""
    B, P, D = x.shape
    Bc, Pc, N = cosine.shape
    assert (Bc, Pc) == (B, P), "x and cosine batch/nPerSpeaker must match"
    assert P >= 2, "nPerSpeaker must be >= 2 (x[:, 1:, :] would be empty / OOB)"
    assert 2 <= k <= N, "top-k size must satisfy 2 <= k <= cohort width"

    # Generation-aware VMEM limit & cohort chunk size (v5e/v6e 128 MiB, v7x 64 MiB).
    try:
        vmem_cap = int(getattr(pltpu.get_tpu_info(), "vmem_capacity_bytes",
                               64 * 1024 * 1024))
    except Exception:
        vmem_cap = 64 * 1024 * 1024                       # conservative (v7x per-core)
    vmem_limit = max(32 * 1024 * 1024, min(vmem_cap * 3 // 4, 96 * 1024 * 1024))

    d_pad = _round_up(D, LANE)
    n_pad128 = _round_up(N, LANE)
    # double-buffered f32 cosine chunk should use <= ~1/3 of the limit
    bytes_per_col = 2 * P * B * 4
    tile_budget = max(LANE, (vmem_limit // 3 // bytes_per_col) // LANE * LANE)
    tile_budget = min(tile_budget, 8192)
    if chunk_cols is not None:
        tile_n = max(LANE, int(chunk_cols) // LANE * LANE)
    elif n_pad128 <= tile_budget:
        tile_n = n_pad128
    else:
        tile_n = tile_budget
    n_pad = _round_up(N, tile_n)
    n_chunks = n_pad // tile_n

    # Layout plumbing in XLA (outside the kernel):
    #  * (B, P, .) -> (P, B, .): per-p slices become free leading-axis indexing
    #  * pad D with zeros and N with a -1e30 sentinel to lane-dense multiples of 128
    xt = jnp.transpose(x, (1, 0, 2)).astype(jnp.float32)
    ct = jnp.transpose(cosine, (1, 0, 2)).astype(jnp.float32)
    if d_pad > D:
        xt = jnp.pad(xt, ((0, 0), (0, 0), (0, d_pad - D)))
    if n_pad > N:
        ct = jnp.pad(ct, ((0, 0), (0, 0), (0, n_pad - N)), constant_values=NEG)
    params = params.astype(jnp.float32)

    kernel = functools.partial(snorm_angleproto_kernel, k=k, mxu_bf16=mxu_bf16)
    # TODO(synk): for very large B additionally tile the B axis (flash-style online LSE
    # over column blocks) and mark it "parallel" so v7x shards it across both TensorCores.
    return pl.pallas_call(
        kernel,
        out_shape=jax.ShapeDtypeStruct((1, 1), jnp.float32),
        grid=(n_chunks,),
        in_specs=[
            pl.BlockSpec(memory_space=pltpu.MemorySpace.SMEM),        # params (scalars)
            pl.BlockSpec((P, B, d_pad), lambda n: (0, 0, 0)),         # x, VMEM-resident
            pl.BlockSpec((P, B, tile_n), lambda n: (0, 0, n)),        # cosine N-chunk
        ],
        out_specs=pl.BlockSpec((1, 1), lambda n: (0, 0)),
        scratch_shapes=[
            pltpu.VMEM((B, k), jnp.float32),    # running top-k, anchor cohort
            pltpu.VMEM((B, k), jnp.float32),    # running top-k, positive cohort
        ],
        compiler_params=pltpu.CompilerParams(
            dimension_semantics=("arbitrary",),  # cohort axis is a reduction
            vmem_limit_bytes=vmem_limit),
    )(params, xt, ct)


def reference_loss(x, cosine, params, k):
    """Pure-JAX reference mirroring the PyTorch forward (label path)."""
    w, b, w2, w3, b2, b3 = (params[i] for i in range(6))
    out_anchor = jnp.mean(x[:, 1:, :], axis=1)
    out_positive = x[:, 0, :]
    cosine_anchor = jnp.mean(cosine[:, 1:, :], axis=1)
    cosine_positive = cosine[:, 0, :]
    eps = 1e-8
    an = out_anchor / jnp.maximum(jnp.linalg.norm(out_anchor, axis=-1, keepdims=True), eps)
    pn = out_positive / jnp.maximum(jnp.linalg.norm(out_positive, axis=-1, keepdims=True), eps)
    out_dot = pn @ an.T

    c1, _ = lax.top_k(cosine_anchor, k)
    c2, _ = lax.top_k(cosine_positive, k)
    mean1 = jnp.mean(c1, axis=-1)
    std1 = jnp.sqrt(jnp.var(c1, axis=-1, ddof=1))
    mean2 = jnp.mean(c2, axis=-1, keepdims=True)
    std2 = jnp.sqrt(jnp.var(c2, axis=-1, ddof=1, keepdims=True))

    hs = lambda v: jnp.clip(v / 6.0 + 0.5, 0.0, 1.0)
    out1 = (out_dot - hs(mean1 * w2 + w3)[None, :]) / hs(std1 * b2 + b3)[None, :]
    out2 = (out_dot - hs(mean2 * w2 + w3)) / hs(std2 * b2 + b3)
    logits = 0.5 * (out1 + out2) * w + b
    Bn = logits.shape[0]
    lse = jax.scipy.special.logsumexp(logits, axis=-1)
    return jnp.mean(lse - logits[jnp.arange(Bn), jnp.arange(Bn)])


if __name__ == "__main__":
    key = jax.random.PRNGKey(0)

    # parameters per nn.Module __init__ defaults: [w, b, w2, w3, b2, b3]
    params_default = jnp.array([10.0, -5.0, 0.0, -2.8, 0.0, 2.8], dtype=jnp.float32)
    # second set with nonzero w2/b2 to exercise the top-k statistics path
    params_exercise = jnp.array([10.0, -5.0, 0.7, -0.4, 0.5, 0.9], dtype=jnp.float32)

    # (B, P, D, N, k, params, mxu_bf16, chunk_cols, tol)
    cases = [
        (8, 2, 32, 16, 8, params_default, False, None, 2e-3),    # single-chunk, f32 MXU
        (8, 2, 32, 16, 8, params_exercise, False, None, 2e-3),   # stats path, f32 MXU
        (8, 2, 32, 16, 8, params_exercise, True, None, 5e-2),    # bf16 MXU operands
        (8, 3, 32, 300, 8, params_exercise, False, 128, 2e-3),   # P>2, 3-chunk streaming
    ]

    for idx, (B, P, D, N, K, prm, use_bf16, chunk_cols, tol) in enumerate(cases):
        kx, kc = jax.random.split(jax.random.fold_in(key, idx))
        x = jax.random.normal(kx, (B, P, D), dtype=jnp.float32)
        cosine = jax.random.uniform(kc, (B, P, N), dtype=jnp.float32,
                                    minval=-1.0, maxval=1.0)

        loss = snorm_angleproto_loss(x, cosine, prm, K,
                                     mxu_bf16=use_bf16, chunk_cols=chunk_cols)
        loss = jax.block_until_ready(loss)
        ref = reference_loss(x, cosine, prm, K)

        assert jnp.isfinite(loss[0, 0]), (idx, loss)
        assert jnp.allclose(loss[0, 0], ref, atol=tol, rtol=tol), (idx, loss, ref)

    print("KERNEL_OK")
</pallas_src>

<mosaic_0001>
module attributes {stable_mosaic.version = 11 : i64} {
  func.func @snorm_angleproto_kernel(%arg0: i32, %arg1: memref<6xf32, #tpu.memory_space<smem>>, %arg2: memref<2x8x128xf32, #tpu.memory_space<vmem>>, %arg3: memref<2x8x128xf32, #tpu.memory_space<vmem>>, %arg4: memref<1x1xf32, #tpu.memory_space<vmem>>, %arg5: memref<8x8xf32, #tpu.memory_space<vmem>>, %arg6: memref<8x8xf32, #tpu.memory_space<vmem>>) attributes {dimension_semantics = [#tpu.dimension_semantics<arbitrary>], iteration_bounds = array<i64: 1>, scalar_prefetch = 0 : i64, scratch_operands = 2 : i64, tpu.core_type = #tpu.core_type<tc>, window_params = [{transform_indices = @transform_0, window_bounds = array<i64: 6>}, {pipeline_mode = #tpu.pipeline_mode<synchronous>, transform_indices = @transform_1, window_bounds = array<i64: 2, 8, 128>}, {transform_indices = @transform_2, window_bounds = array<i64: 2, 8, 128>}, {pipeline_mode = #tpu.pipeline_mode<synchronous>, transform_indices = @transform_3, window_bounds = array<i64: 1, 1>}]} {
    %c0_i32 = arith.constant 0 : i32
    %0 = arith.cmpi eq, %arg0, %c0_i32 : i32
    %1 = arith.extui %0 : i1 to i32
    %c0_i32_0 = arith.constant 0 : i32
    %2 = arith.cmpi ne, %1, %c0_i32_0 : i32
    scf.if %2 {
      %cst_97 = arith.constant -1.000000e+30 : f32
      %222 = vector.broadcast %cst_97 : f32 to vector<8x8xf32>
      %c0_98 = arith.constant 0 : index
      %c0_99 = arith.constant 0 : index
      %223 = vector.load %arg5[%c0_98, %c0_99] : memref<8x8xf32, #tpu.memory_space<vmem>>, vector<8x8xf32>
      tpu.vector_store %arg5[%c0_98, %c0_99], %222 {strides = array<i32>} : memref<8x8xf32, #tpu.memory_space<vmem>>, vector<8x8xf32>,
      %cst_100 = arith.constant -1.000000e+30 : f32
      %224 = vector.broadcast %cst_100 : f32 to vector<8x8xf32>
      %c0_101 = arith.constant 0 : index
      %c0_102 = arith.constant 0 : index
      %225 = vector.load %arg6[%c0_101, %c0_102] : memref<8x8xf32, #tpu.memory_space<vmem>>, vector<8x8xf32>
      tpu.vector_store %arg6[%c0_101, %c0_102], %224 {strides = array<i32>} : memref<8x8xf32, #tpu.memory_space<vmem>>, vector<8x8xf32>,
    } else {
    }
    %c1 = arith.constant 1 : index
    %c0 = arith.constant 0 : index
    %c0_1 = arith.constant 0 : index
    %3 = vector.load %arg3[%c1, %c0, %c0_1] : memref<2x8x128xf32, #tpu.memory_space<vmem>>, vector<1x8x128xf32>
    %4 = vector.shape_cast %3 : vector<1x8x128xf32> to vector<8x128xf32>
    %cst = arith.constant 1.000000e+00 : f32
    %5 = vector.broadcast %cst : f32 to vector<8x128xf32>
    %6 = arith.mulf %4, %5 : vector<8x128xf32>
    %c0_2 = arith.constant 0 : index
    %c0_3 = arith.constant 0 : index
    %c0_4 = arith.constant 0 : index
    %7 = vector.load %arg3[%c0_2, %c0_3, %c0_4] : memref<2x8x128xf32, #tpu.memory_space<vmem>>, vector<1x8x128xf32>
    %8 = vector.shape_cast %7 : vector<1x8x128xf32> to vector<8x128xf32>
    %c0_5 = arith.constant 0 : index
    %c0_6 = arith.constant 0 : index
    %9 = vector.load %arg5[%c0_5, %c0_6] : memref<8x8xf32, #tpu.memory_space<vmem>>, vector<8x8xf32>
    %cst_7 = arith.constant dense<0xFF800000> : vector<8xf32>
    %10 = vector.multi_reduction <maximumf>, %6, %cst_7 [1] : vector<8x128xf32> to vector<8xf32>
    %11 = vector.shape_cast %10 : vector<8xf32> to vector<8x1xf32>
    %cst_8 = arith.constant dense<0xFF800000> : vector<8xf32>
    %12 = vector.multi_reduction <maximumf>, %9, %cst_8 [1] : vector<8x8xf32> to vector<8xf32>
    %13 = vector.shape_cast %12 : vector<8xf32> to vector<8x1xf32>
    %14 = arith.maximumf %11, %13 : vector<8x1xf32>
    %c0_9 = arith.constant 0 : index
    %c0_10 = arith.constant 0 : index
    %15 = vector.load %arg5[%c0_9, %c0_10] : memref<8x8xf32, #tpu.memory_space<vmem>>, vector<8x1xf32>
    tpu.vector_store %arg5[%c0_9, %c0_10], %14 {strides = array<i32>} : memref<8x8xf32, #tpu.memory_space<vmem>>, vector<8x1xf32>,
    %16 = vector.broadcast %14 : vector<8x1xf32> to vector<8x128xf32>
    %17 = arith.cmpf oeq, %6, %16 : vector<8x128xf32>
    %cst_11 = arith.constant -1.000000e+30 : f32
    %18 = vector.broadcast %cst_11 : f32 to vector<8x128xf32>
    %19 = arith.select %17, %18, %6 : vector<8x128xi1>, vector<8x128xf32>
    %20 = vector.broadcast %14 : vector<8x1xf32> to vector<8x8xf32>
    %21 = arith.cmpf oeq, %9, %20 : vector<8x8xf32>
    %cst_12 = arith.constant -1.000000e+30 : f32
    %22 = vector.broadcast %cst_12 : f32 to vector<8x8xf32>
    %23 = arith.select %21, %22, %9 : vector<8x8xi1>, vector<8x8xf32>
    %cst_13 = arith.constant dense<0xFF800000> : vector<8xf32>
    %24 = vector.multi_reduction <maximumf>, %19, %cst_13 [1] : vector<8x128xf32> to vector<8xf32>
    %25 = vector.shape_cast %24 : vector<8xf32> to vector<8x1xf32>
    %cst_14 = arith.constant dense<0xFF800000> : vector<8xf32>
    %26 = vector.multi_reduction <maximumf>, %23, %cst_14 [1] : vector<8x8xf32> to vector<8xf32>
    %27 = vector.shape_cast %26 : vector<8xf32> to vector<8x1xf32>
    %28 = arith.maximumf %25, %27 : vector<8x1xf32>
    %c0_15 = arith.constant 0 : index
    %c1_16 = arith.constant 1 : index
    %29 = vector.load %arg5[%c0_15, %c1_16] : memref<8x8xf32, #tpu.memory_space<vmem>>, vector<8x1xf32>
    tpu.vector_store %arg5[%c0_15, %c1_16], %28 {strides = array<i32>} : memref<8x8xf32, #tpu.memory_space<vmem>>, vector<8x1xf32>,
    %30 = vector.broadcast %28 : vector<8x1xf32> to vector<8x128xf32>
    %31 = arith.cmpf oeq, %19, %30 : vector<8x128xf32>
    %cst_17 = arith.constant -1.000000e+30 : f32
    %32 = vector.broadcast %cst_17 : f32 to vector<8x128xf32>
    %33 = arith.select %31, %32, %19 : vector<8x128xi1>, vector<8x128xf32>
    %34 = vector.broadcast %28 : vector<8x1xf32> to vector<8x8xf32>
    %35 = arith.cmpf oeq, %23, %34 : vector<8x8xf32>
    %cst_18 = arith.constant -1.000000e+30 : f32
    %36 = vector.broadcast %cst_18 : f32 to vector<8x8xf32>
    %37 = arith.select %35, %36, %23 : vector<8x8xi1>, vector<8x8xf32>
    %cst_19 = arith.constant dense<0xFF800000> : vector<8xf32>
    %38 = vector.multi_reduction <maximumf>, %33, %cst_19 [1] : vector<8x128xf32> to vector<8xf32>
    %39 = vector.shape_cast %38 : vector<8xf32> to vector<8x1xf32>
    %cst_20 = arith.constant dense<0xFF800000> : vector<8xf32>
    %40 = vector.multi_reduction <maximumf>, %37, %cst_20 [1] : vector<8x8xf32> to vector<8xf32>
    %41 = vector.shape_cast %40 : vector<8xf32> to vector<8x1xf32>
    %42 = arith.maximumf %39, %41 : vector<8x1xf32>
    %c0_21 = arith.constant 0 : index
    %c2 = arith.constant 2 : index
    %43 = vector.load %arg5[%c0_21, %c2] : memref<8x8xf32, #tpu.memory_space<vmem>>, vector<8x1xf32>
    tpu.vector_store %arg5[%c0_21, %c2], %42 {strides = array<i32>} : memref<8x8xf32, #tpu.memory_space<vmem>>, vector<8x1xf32>,
    %44 = vector.broadcast %42 : vector<8x1xf32> to vector<8x128xf32>
    %45 = arith.cmpf oeq, %33, %44 : vector<8x128xf32>
    %cst_22 = arith.constant -1.000000e+30 : f32
    %46 = vector.broadcast %cst_22 : f32 to vector<8x128xf32>
    %47 = arith.select %45, %46, %33 : vector<8x128xi1>, vector<8x128xf32>
    %48 = vector.broadcast %42 : vector<8x1xf32> to vector<8x8xf32>
    %49 = arith.cmpf oeq, %37, %48 : vector<8x8xf32>
    %cst_23 = arith.constant -1.000000e+30 : f32
    %50 = vector.broadcast %cst_23 : f32 to vector<8x8xf32>
    %51 = arith.select %49, %50, %37 : vector<8x8xi1>, vector<8x8xf32>
    %cst_24 = arith.constant dense<0xFF800000> : vector<8xf32>
    %52 = vector.multi_reduction <maximumf>, %47, %cst_24 [1] : vector<8x128xf32> to vector<8xf32>
    %53 = vector.shape_cast %52 : vector<8xf32> to vector<8x1xf32>
    %cst_25 = arith.constant dense<0xFF800000> : vector<8xf32>
    %54 = vector.multi_reduction <maximumf>, %51, %cst_25 [1] : vector<8x8xf32> to vector<8xf32>
    %55 = vector.shape_cast %54 : vector<8xf32> to vector<8x1xf32>
    %56 = arith.maximumf %53, %55 : vector<8x1xf32>
    %c0_26 = arith.constant 0 : index
    %c3 = arith.constant 3 : index
    %57 = vector.load %arg5[%c0_26, %c3] : memref<8x8xf32, #tpu.memory_space<vmem>>, vector<8x1xf32>
    tpu.vector_store %arg5[%c0_26, %c3], %56 {strides = array<i32>} : memref<8x8xf32, #tpu.memory_space<vmem>>, vector<8x1xf32>,
    %58 = vector.broadcast %56 : vector<8x1xf32> to vector<8x128xf32>
    %59 = arith.cmpf oeq, %47, %58 : vector<8x128xf32>
    %cst_27 = arith.constant -1.000000e+30 : f32
    %60 = vector.broadcast %cst_27 : f32 to vector<8x128xf32>
    %61 = arith.select %59, %60, %47 : vector<8x128xi1>, vector<8x128xf32>
    %62 = vector.broadcast %56 : vector<8x1xf32> to vector<8x8xf32>
    %63 = arith.cmpf oeq, %51, %62 : vector<8x8xf32>
    %cst_28 = arith.constant -1.000000e+30 : f32
    %64 = vector.broadcast %cst_28 : f32 to vector<8x8xf32>
    %65 = arith.select %63, %64, %51 : vector<8x8xi1>, vector<8x8xf32>
    %cst_29 = arith.constant dense<0xFF800000> : vector<8xf32>
    %66 = vector.multi_reduction <maximumf>, %61, %cst_29 [1] : vector<8x128xf32> to vector<8xf32>
    %67 = vector.shape_cast %66 : vector<8xf32> to vector<8x1xf32>
    %cst_30 = arith.constant dense<0xFF800000> : vector<8xf32>
    %68 = vector.multi_reduction <maximumf>, %65, %cst_30 [1] : vector<8x8xf32> to vector<8xf32>
    %69 = vector.shape_cast %68 : vector<8xf32> to vector<8x1xf32>
    %70 = arith.maximumf %67, %69 : vector<8x1xf32>
    %c0_31 = arith.constant 0 : index
    %c4 = arith.constant 4 : index
    %71 = vector.load %arg5[%c0_31, %c4] : memref<8x8xf32, #tpu.memory_space<vmem>>, vector<8x1xf32>
    tpu.vector_store %arg5[%c0_31, %c4], %70 {strides = array<i32>} : memref<8x8xf32, #tpu.memory_space<vmem>>, vector<8x1xf32>,
    %72 = vector.broadcast %70 : vector<8x1xf32> to vector<8x128xf32>
    %73 = arith.cmpf oeq, %61, %72 : vector<8x128xf32>
    %cst_32 = arith.constant -1.000000e+30 : f32
    %74 = vector.broadcast %cst_32 : f32 to vector<8x128xf32>
    %75 = arith.select %73, %74, %61 : vector<8x128xi1>, vector<8x128xf32>
    %76 = vector.broadcast %70 : vector<8x1xf32> to vector<8x8xf32>
    %77 = arith.cmpf oeq, %65, %76 : vector<8x8xf32>
    %cst_33 = arith.constant -1.000000e+30 : f32
    %78 = vector.broadcast %cst_33 : f32 to vector<8x8xf32>
    %79 = arith.select %77, %78, %65 : vector<8x8xi1>, vector<8x8xf32>
    %cst_34 = arith.constant dense<0xFF800000> : vector<8xf32>
    %80 = vector.multi_reduction <maximumf>, %75, %cst_34 [1] : vector<8x128xf32> to vector<8xf32>
    %81 = vector.shape_cast %80 : vector<8xf32> to vector<8x1xf32>
    %cst_35 = arith.constant dense<0xFF800000> : vector<8xf32>
    %82 = vector.multi_reduction <maximumf>, %79, %cst_35 [1] : vector<8x8xf32> to vector<8xf32>
    %83 = vector.shape_cast %82 : vector<8xf32> to vector<8x1xf32>
    %84 = arith.maximumf %81, %83 : vector<8x1xf32>
    %c0_36 = arith.constant 0 : index
    %c5 = arith.constant 5 : index
    %85 = vector.load %arg5[%c0_36, %c5] : memref<8x8xf32, #tpu.memory_space<vmem>>, vector<8x1xf32>
    tpu.vector_store %arg5[%c0_36, %c5], %84 {strides = array<i32>} : memref<8x8xf32, #tpu.memory_space<vmem>>, vector<8x1xf32>,
    %86 = vector.broadcast %84 : vector<8x1xf32> to vector<8x128xf32>
    %87 = arith.cmpf oeq, %75, %86 : vector<8x128xf32>
    %cst_37 = arith.constant -1.000000e+30 : f32
    %88 = vector.broadcast %cst_37 : f32 to vector<8x128xf32>
    %89 = arith.select %87, %88, %75 : vector<8x128xi1>, vector<8x128xf32>
    %90 = vector.broadcast %84 : vector<8x1xf32> to vector<8x8xf32>
    %91 = arith.cmpf oeq, %79, %90 : vector<8x8xf32>
    %cst_38 = arith.constant -1.000000e+30 : f32
    %92 = vector.broadcast %cst_38 : f32 to vector<8x8xf32>
    %93 = arith.select %91, %92, %79 : vector<8x8xi1>, vector<8x8xf32>
    %cst_39 = arith.constant dense<0xFF800000> : vector<8xf32>
    %94 = vector.multi_reduction <maximumf>, %89, %cst_39 [1] : vector<8x128xf32> to vector<8xf32>
    %95 = vector.shape_cast %94 : vector<8xf32> to vector<8x1xf32>
    %cst_40 = arith.constant dense<0xFF800000> : vector<8xf32>
    %96 = vector.multi_reduction <maximumf>, %93, %cst_40 [1] : vector<8x8xf32> to vector<8xf32>
    %97 = vector.shape_cast %96 : vector<8xf32> to vector<8x1xf32>
    %98 = arith.maximumf %95, %97 : vector<8x1xf32>
    %c0_41 = arith.constant 0 : index
    %c6 = arith.constant 6 : index
    %99 = vector.load %arg5[%c0_41, %c6] : memref<8x8xf32, #tpu.memory_space<vmem>>, vector<8x1xf32>
    tpu.vector_store %arg5[%c0_41, %c6], %98 {strides = array<i32>} : memref<8x8xf32, #tpu.memory_space<vmem>>, vector<8x1xf32>,
    %100 = vector.broadcast %98 : vector<8x1xf32> to vector<8x128xf32>
    %101 = arith.cmpf oeq, %89, %100 : vector<8x128xf32>
    %cst_42 = arith.constant -1.000000e+30 : f32
    %102 = vector.broadcast %cst_42 : f32 to vector<8x128xf32>
    %103 = arith.select %101, %102, %89 : vector<8x128xi1>, vector<8x128xf32>
    %104 = vector.broadcast %98 : vector<8x1xf32> to vector<8x8xf32>
    %105 = arith.cmpf oeq, %93, %104 : vector<8x8xf32>
    %cst_43 = arith.constant -1.000000e+30 : f32
    %106 = vector.broadcast %cst_43 : f32 to vector<8x8xf32>
    %107 = arith.select %105, %106, %93 : vector<8x8xi1>, vector<8x8xf32>
    %cst_44 = arith.constant dense<0xFF800000> : vector<8xf32>
    %108 = vector.multi_reduction <maximumf>, %103, %cst_44 [1] : vector<8x128xf32> to vector<8xf32>
    %109 = vector.shape_cast %108 : vector<8xf32> to vector<8x1xf32>
    %cst_45 = arith.constant dense<0xFF800000> : vector<8xf32>
    %110 = vector.multi_reduction <maximumf>, %107, %cst_45 [1] : vector<8x8xf32> to vector<8xf32>
    %111 = vector.shape_cast %110 : vector<8xf32> to vector<8x1xf32>
    %112 = arith.maximumf %109, %111 : vector<8x1xf32>
    %c0_46 = arith.constant 0 : index
    %c7 = arith.constant 7 : index
    %113 = vector.load %arg5[%c0_46, %c7] : memref<8x8xf32, #tpu.memory_space<vmem>>, vector<8x1xf32>
    tpu.vector_store %arg5[%c0_46, %c7], %112 {strides = array<i32>} : memref<8x8xf32, #tpu.memory_space<vmem>>, vector<8x1xf32>,
    %c0_47 = arith.constant 0 : index
    %c0_48 = arith.constant 0 : index
    %114 = vector.load %arg6[%c0_47, %c0_48] : memref<8x8xf32, #tpu.memory_space<vmem>>, vector<8x8xf32>
    %cst_49 = arith.constant dense<0xFF800000> : vector<8xf32>
    %115 = vector.multi_reduction <maximumf>, %8, %cst_49 [1] : vector<8x128xf32> to vector<8xf32>
    %116 = vector.shape_cast %115 : vector<8xf32> to vector<8x1xf32>
    %cst_50 = arith.constant dense<0xFF800000> : vector<8xf32>
    %117 = vector.multi_reduction <maximumf>, %114, %cst_50 [1] : vector<8x8xf32> to vector<8xf32>
    %118 = vector.shape_cast %117 : vector<8xf32> to vector<8x1xf32>
    %119 = arith.maximumf %116, %118 : vector<8x1xf32>
    %c0_51 = arith.constant 0 : index
    %c0_52 = arith.constant 0 : index
    %120 = vector.load %arg6[%c0_51, %c0_52] : memref<8x8xf32, #tpu.memory_space<vmem>>, vector<8x1xf32>
    tpu.vector_store %arg6[%c0_51, %c0_52], %119 {strides = array<i32>} : memref<8x8xf32, #tpu.memory_space<vmem>>, vector<8x1xf32>,
    %121 = vector.broadcast %119 : vector<8x1xf32> to vector<8x128xf32>
    %122 = arith.cmpf oeq, %8, %121 : vector<8x128xf32>
    %cst_53 = arith.constant -1.000000e+30 : f32
    %123 = vector.broadcast %cst_53 : f32 to vector<8x128xf32>
    %124 = arith.select %122, %123, %8 : vector<8x128xi1>, vector<8x128xf32>
    %125 = vector.broadcast %119 : vector<8x1xf32> to vector<8x8xf32>
    %126 = arith.cmpf oeq, %114, %125 : vector<8x8xf32>
    %cst_54 = arith.constant -1.000000e+30 : f32
    %127 = vector.broadcast %cst_54 : f32 to vector<8x8xf32>
    %128 = arith.select %126, %127, %114 : vector<8x8xi1>, vector<8x8xf32>
    %cst_55 = arith.constant dense<0xFF800000> : vector<8xf32>
    %129 = vector.multi_reduction <maximumf>, %124, %cst_55 [1] : vector<8x128xf32> to vector<8xf32>
    %130 = vector.shape_cast %129 : vector<8xf32> to vector<8x1xf32>
    %cst_56 = arith.constant dense<0xFF800000> : vector<8xf32>
    %131 = vector.multi_reduction <maximumf>, %128, %cst_56 [1] : vector<8x8xf32> to vector<8xf32>
    %132 = vector.shape_cast %131 : vector<8xf32> to vector<8x1xf32>
    %133 = arith.maximumf %130, %132 : vector<8x1xf32>
    %c0_57 = arith.constant 0 : index
    %c1_58 = arith.constant 1 : index
    %134 = vector.load %arg6[%c0_57, %c1_58] : memref<8x8xf32, #tpu.memory_space<vmem>>, vector<8x1xf32>
    tpu.vector_store %arg6[%c0_57, %c1_58], %133 {strides = array<i32>} : memref<8x8xf32, #tpu.memory_space<vmem>>, vector<8x1xf32>,
    %135 = vector.broadcast %133 : vector<8x1xf32> to vector<8x128xf32>
    %136 = arith.cmpf oeq, %124, %135 : vector<8x128xf32>
    %cst_59 = arith.constant -1.000000e+30 : f32
    %137 = vector.broadcast %cst_59 : f32 to vector<8x128xf32>
    %138 = arith.select %136, %137, %124 : vector<8x128xi1>, vector<8x128xf32>
    %139 = vector.broadcast %133 : vector<8x1xf32> to vector<8x8xf32>
    %140 = arith.cmpf oeq, %128, %139 : vector<8x8xf32>
    %cst_60 = arith.constant -1.000000e+30 : f32
    %141 = vector.broadcast %cst_60 : f32 to vector<8x8xf32>
    %142 = arith.select %140, %141, %128 : vector<8x8xi1>, vector<8x8xf32>
    %cst_61 = arith.constant dense<0xFF800000> : vector<8xf32>
    %143 = vector.multi_reduction <maximumf>, %138, %cst_61 [1] : vector<8x128xf32> to vector<8xf32>
    %144 = vector.shape_cast %143 : vector<8xf32> to vector<8x1xf32>
    %cst_62 = arith.constant dense<0xFF800000> : vector<8xf32>
    %145 = vector.multi_reduction <maximumf>, %142, %cst_62 [1] : vector<8x8xf32> to vector<8xf32>
    %146 = vector.shape_cast %145 : vector<8xf32> to vector<8x1xf32>
    %147 = arith.maximumf %144, %146 : vector<8x1xf32>
    %c0_63 = arith.constant 0 : index
    %c2_64 = arith.constant 2 : index
    %148 = vector.load %arg6[%c0_63, %c2_64] : memref<8x8xf32, #tpu.memory_space<vmem>>, vector<8x1xf32>
    tpu.vector_store %arg6[%c0_63, %c2_64], %147 {strides = array<i32>} : memref<8x8xf32, #tpu.memory_space<vmem>>, vector<8x1xf32>,
    %149 = vector.broadcast %147 : vector<8x1xf32> to vector<8x128xf32>
    %150 = arith.cmpf oeq, %138, %149 : vector<8x128xf32>
    %cst_65 = arith.constant -1.000000e+30 : f32
    %151 = vector.broadcast %cst_65 : f32 to vector<8x128xf32>
    %152 = arith.select %150, %151, %138 : vector<8x128xi1>, vector<8x128xf32>
    %153 = vector.broadcast %147 : vector<8x1xf32> to vector<8x8xf32>
    %154 = arith.cmpf oeq, %142, %153 : vector<8x8xf32>
    %cst_66 = arith.constant -1.000000e+30 : f32
    %155 = vector.broadcast %cst_66 : f32 to vector<8x8xf32>
    %156 = arith.select %154, %155, %142 : vector<8x8xi1>, vector<8x8xf32>
    %cst_67 = arith.constant dense<0xFF800000> : vector<8xf32>
    %157 = vector.multi_reduction <maximumf>, %152, %cst_67 [1] : vector<8x128xf32> to vector<8xf32>
    %158 = vector.shape_cast %157 : vector<8xf32> to vector<8x1xf32>
    %cst_68 = arith.constant dense<0xFF800000> : vector<8xf32>
    %159 = vector.multi_reduction <maximumf>, %156, %cst_68 [1] : vector<8x8xf32> to vector<8xf32>
    %160 = vector.shape_cast %159 : vector<8xf32> to vector<8x1xf32>
    %161 = arith.maximumf %158, %160 : vector<8x1xf32>
    %c0_69 = arith.constant 0 : index
    %c3_70 = arith.constant 3 : index
    %162 = vector.load %arg6[%c0_69, %c3_70] : memref<8x8xf32, #tpu.memory_space<vmem>>, vector<8x1xf32>
    tpu.vector_store %arg6[%c0_69, %c3_70], %161 {strides = array<i32>} : memref<8x8xf32, #tpu.memory_space<vmem>>, vector<8x1xf32>,
    %163 = vector.broadcast %161 : vector<8x1xf32> to vector<8x128xf32>
    %164 = arith.cmpf oeq, %152, %163 : vector<8x128xf32>
    %cst_71 = arith.constant -1.000000e+30 : f32
    %165 = vector.broadcast %cst_71 : f32 to vector<8x128xf32>
    %166 = arith.select %164, %165, %152 : vector<8x128xi1>, vector<8x128xf32>
    %167 = vector.broadcast %161 : vector<8x1xf32> to vector<8x8xf32>
    %168 = arith.cmpf oeq, %156, %167 : vector<8x8xf32>
    %cst_72 = arith.constant -1.000000e+30 : f32
    %169 = vector.broadcast %cst_72 : f32 to vector<8x8xf32>
    %170 = arith.select %168, %169, %156 : vector<8x8xi1>, vector<8x8xf32>
    %cst_73 = arith.constant dense<0xFF800000> : vector<8xf32>
    %171 = vector.multi_reduction <maximumf>, %166, %cst_73 [1] : vector<8x128xf32> to vector<8xf32>
    %172 = vector.shape_cast %171 : vector<8xf32> to vector<8x1xf32>
    %cst_74 = arith.constant dense<0xFF800000> : vector<8xf32>
    %173 = vector.multi_reduction <maximumf>, %170, %cst_74 [1] : vector<8x8xf32> to vector<8xf32>
    %174 = vector.shape_cast %173 : vector<8xf32> to vector<8x1xf32>
    %175 = arith.maximumf %172, %174 : vector<8x1xf32>
    %c0_75 = arith.constant 0 : index
    %c4_76 = arith.constant 4 : index
    %176 = vector.load %arg6[%c0_75, %c4_76] : memref<8x8xf32, #tpu.memory_space<vmem>>, vector<8x1xf32>
    tpu.vector_store %arg6[%c0_75, %c4_76], %175 {strides = array<i32>} : memref<8x8xf32, #tpu.memory_space<vmem>>, vector<8x1xf32>,
    %177 = vector.broadcast %175 : vector<8x1xf32> to vector<8x128xf32>
    %178 = arith.cmpf oeq, %166, %177 : vector<8x128xf32>
    %cst_77 = arith.constant -1.000000e+30 : f32
    %179 = vector.broadcast %cst_77 : f32 to vector<8x128xf32>
    %180 = arith.select %178, %179, %166 : vector<8x128xi1>, vector<8x128xf32>
    %181 = vector.broadcast %175 : vector<8x1xf32> to vector<8x8xf32>
    %182 = arith.cmpf oeq, %170, %181 : vector<8x8xf32>
    %cst_78 = arith.constant -1.000000e+30 : f32
    %183 = vector.broadcast %cst_78 : f32 to vector<8x8xf32>
    %184 = arith.select %182, %183, %170 : vector<8x8xi1>, vector<8x8xf32>
    %cst_79 = arith.constant dense<0xFF800000> : vector<8xf32>
    %185 = vector.multi_reduction <maximumf>, %180, %cst_79 [1] : vector<8x128xf32> to vector<8xf32>
    %186 = vector.shape_cast %185 : vector<8xf32> to vector<8x1xf32>
    %cst_80 = arith.constant dense<0xFF800000> : vector<8xf32>
    %187 = vector.multi_reduction <maximumf>, %184, %cst_80 [1] : vector<8x8xf32> to vector<8xf32>
    %188 = vector.shape_cast %187 : vector<8xf32> to vector<8x1xf32>
    %189 = arith.maximumf %186, %188 : vector<8x1xf32>
    %c0_81 = arith.constant 0 : index
    %c5_82 = arith.constant 5 : index
    %190 = vector.load %arg6[%c0_81, %c5_82] : memref<8x8xf32, #tpu.memory_space<vmem>>, vector<8x1xf32>
    tpu.vector_store %arg6[%c0_81, %c5_82], %189 {strides = array<i32>} : memref<8x8xf32, #tpu.memory_space<vmem>>, vector<8x1xf32>,
    %191 = vector.broadcast %189 : vector<8x1xf32> to vector<8x128xf32>
    %192 = arith.cmpf oeq, %180, %191 : vector<8x128xf32>
    %cst_83 = arith.constant -1.000000e+30 : f32
    %193 = vector.broadcast %cst_83 : f32 to vector<8x128xf32>
    %194 = arith.select %192, %193, %180 : vector<8x128xi1>, vector<8x128xf32>
    %195 = vector.broadcast %189 : vector<8x1xf32> to vector<8x8xf32>
    %196 = arith.cmpf oeq, %184, %195 : vector<8x8xf32>
    %cst_84 = arith.constant -1.000000e+30 : f32
    %197 = vector.broadcast %cst_84 : f32 to vector<8x8xf32>
    %198 = arith.select %196, %197, %184 : vector<8x8xi1>, vector<8x8xf32>
    %cst_85 = arith.constant dense<0xFF800000> : vector<8xf32>
    %199 = vector.multi_reduction <maximumf>, %194, %cst_85 [1] : vector<8x128xf32> to vector<8xf32>
    %200 = vector.shape_cast %199 : vector<8xf32> to vector<8x1xf32>
    %cst_86 = arith.constant dense<0xFF800000> : vector<8xf32>
    %201 = vector.multi_reduction <maximumf>, %198, %cst_86 [1] : vector<8x8xf32> to vector<8xf32>
    %202 = vector.shape_cast %201 : vector<8xf32> to vector<8x1xf32>
    %203 = arith.maximumf %200, %202 : vector<8x1xf32>
    %c0_87 = arith.constant 0 : index
    %c6_88 = arith.constant 6 : index
    %204 = vector.load %arg6[%c0_87, %c6_88] : memref<8x8xf32, #tpu.memory_space<vmem>>, vector<8x1xf32>
    tpu.vector_store %arg6[%c0_87, %c6_88], %203 {strides = array<i32>} : memref<8x8xf32, #tpu.memory_space<vmem>>, vector<8x1xf32>,
    %205 = vector.broadcast %203 : vector<8x1xf32> to vector<8x128xf32>
    %206 = arith.cmpf oeq, %194, %205 : vector<8x128xf32>
    %cst_89 = arith.constant -1.000000e+30 : f32
    %207 = vector.broadcast %cst_89 : f32 to vector<8x128xf32>
    %208 = arith.select %206, %207, %194 : vector<8x128xi1>, vector<8x128xf32>
    %209 = vector.broadcast %203 : vector<8x1xf32> to vector<8x8xf32>
    %210 = arith.cmpf oeq, %198, %209 : vector<8x8xf32>
    %cst_90 = arith.constant -1.000000e+30 : f32
    %211 = vector.broadcast %cst_90 : f32 to vector<8x8xf32>
    %212 = arith.select %210, %211, %198 : vector<8x8xi1>, vector<8x8xf32>
    %cst_91 = arith.constant dense<0xFF800000> : vector<8xf32>
    %213 = vector.multi_reduction <maximumf>, %208, %cst_91 [1] : vector<8x128xf32> to vector<8xf32>
    %214 = vector.shape_cast %213 : vector<8xf32> to vector<8x1xf32>
    %cst_92 = arith.constant dense<0xFF800000> : vector<8xf32>
    %215 = vector.multi_reduction <maximumf>, %212, %cst_92 [1] : vector<8x8xf32> to vector<8xf32>
    %216 = vector.shape_cast %215 : vector<8xf32> to vector<8x1xf32>
    %217 = arith.maximumf %214, %216 : vector<8x1xf32>
    %c0_93 = arith.constant 0 : index
    %c7_94 = arith.constant 7 : index
    %218 = vector.load %arg6[%c0_93, %c7_94] : memref<8x8xf32, #tpu.memory_space<vmem>>, vector<8x1xf32>
    tpu.vector_store %arg6[%c0_93, %c7_94], %217 {strides = array<i32>} : memref<8x8xf32, #tpu.memory_space<vmem>>, vector<8x1xf32>,
    %c0_i32_95 = arith.constant 0 : i32
    %219 = arith.cmpi eq, %arg0, %c0_i32_95 : i32
    %220 = arith.extui %219 : i1 to i32
    %c0_i32_96 = arith.constant 0 : i32
    %221 = arith.cmpi ne, %220, %c0_i32_96 : i32
    scf.if %221 {
      %c0_97 = arith.constant 0 : index
      %222 = memref.load %arg1[%c0_97] : memref<6xf32, #tpu.memory_space<smem>>
      %c1_98 = arith.constant 1 : index
      %223 = memref.load %arg1[%c1_98] : memref<6xf32, #tpu.memory_space<smem>>
      %c2_99 = arith.constant 2 : index
      %224 = memref.load %arg1[%c2_99] : memref<6xf32, #tpu.memory_space<smem>>
      %c3_100 = arith.constant 3 : index
      %225 = memref.load %arg1[%c3_100] : memref<6xf32, #tpu.memory_space<smem>>
      %c4_101 = arith.constant 4 : index
      %226 = memref.load %arg1[%c4_101] : memref<6xf32, #tpu.memory_space<smem>>
      %c5_102 = arith.constant 5 : index
      %227 = memref.load %arg1[%c5_102] : memref<6xf32, #tpu.memory_space<smem>>
      %c1_103 = arith.constant 1 : index
      %c0_104 = arith.constant 0 : index
      %c0_105 = arith.constant 0 : index
      %228 = vector.load %arg2[%c1_103, %c0_104, %c0_105] : memref<2x8x128xf32, #tpu.memory_space<vmem>>, vector<1x8x128xf32>
      %229 = vector.shape_cast %228 : vector<1x8x128xf32> to vector<8x128xf32>
      %cst_106 = arith.constant 1.000000e+00 : f32
      %230 = vector.broadcast %cst_106 : f32 to vector<8x128xf32>
      %231 = arith.mulf %229, %230 : vector<8x128xf32>
      %c0_107 = arith.constant 0 : index
      %c0_108 = arith.constant 0 : index
      %c0_109 = arith.constant 0 : index
      %232 = vector.load %arg2[%c0_107, %c0_108, %c0_109] : memref<2x8x128xf32, #tpu.memory_space<vmem>>, vector<1x8x128xf32>
      %233 = vector.shape_cast %232 : vector<1x8x128xf32> to vector<8x128xf32>
      %234 = arith.mulf %231, %231 : vector<8x128xf32>
      %cst_110 = arith.constant dense<0.000000e+00> : vector<8xf32>
      %235 = vector.multi_reduction <add>, %234, %cst_110 [1] : vector<8x128xf32> to vector<8xf32>
      %236 = vector.shape_cast %235 : vector<8xf32> to vector<8x1xf32>
      %cst_111 = arith.constant 1.000000e-16 : f32
      %237 = vector.broadcast %cst_111 : f32 to vector<8x1xf32>
      %238 = arith.maximumf %236, %237 : vector<8x1xf32>
      %239 = math.rsqrt %238 : vector<8x1xf32>
      %240 = vector.broadcast %239 : vector<8x1xf32> to vector<8x128xf32>
      %241 = arith.mulf %231, %240 : vector<8x128xf32>
      %242 = arith.mulf %233, %233 : vector<8x128xf32>
      %cst_112 = arith.constant dense<0.000000e+00> : vector<8xf32>
      %243 = vector.multi_reduction <add>, %242, %cst_112 [1] : vector<8x128xf32> to vector<8xf32>
      %244 = vector.shape_cast %243 : vector<8xf32> to vector<8x1xf32>
      %cst_113 = arith.constant 1.000000e-16 : f32
      %245 = vector.broadcast %cst_113 : f32 to vector<8x1xf32>
      %246 = arith.maximumf %244, %245 : vector<8x1xf32>
      %247 = math.rsqrt %246 : vector<8x1xf32>
      %248 = vector.broadcast %247 : vector<8x1xf32> to vector<8x128xf32>
      %249 = arith.mulf %233, %248 : vector<8x128xf32>
      %c0_114 = arith.constant 0 : index
      %c0_115 = arith.constant 0 : index
      %250 = vector.load %arg5[%c0_114, %c0_115] : memref<8x8xf32, #tpu.memory_space<vmem>>, vector<8x8xf32>
      %cst_116 = arith.constant dense<0.000000e+00> : vector<8xf32>
      %251 = vector.multi_reduction <add>, %250, %cst_116 [1] : vector<8x8xf32> to vector<8xf32>
      %252 = vector.shape_cast %251 : vector<8xf32> to vector<8x1xf32>
      %cst_117 = arith.constant 1.250000e-01 : f32
      %253 = vector.broadcast %cst_117 : f32 to vector<8x1xf32>
      %254 = arith.mulf %252, %253 : vector<8x1xf32>
      %255 = vector.broadcast %254 : vector<8x1xf32> to vector<8x8xf32>
      %256 = arith.subf %250, %255 : vector<8x8xf32>
      %257 = arith.mulf %256, %256 : vector<8x8xf32>
      %cst_118 = arith.constant dense<0.000000e+00> : vector<8xf32>
      %258 = vector.multi_reduction <add>, %257, %cst_118 [1] : vector<8x8xf32> to vector<8xf32>
      %259 = vector.shape_cast %258 : vector<8xf32> to vector<8x1xf32>
      %cst_119 = arith.constant 0.142857149 : f32
      %260 = vector.broadcast %cst_119 : f32 to vector<8x1xf32>
      %261 = arith.mulf %259, %260 : vector<8x1xf32>
      %262 = math.sqrt %261 : vector<8x1xf32>
      %c0_120 = arith.constant 0 : index
      %c0_121 = arith.constant 0 : index
      %263 = vector.load %arg6[%c0_120, %c0_121] : memref<8x8xf32, #tpu.memory_space<vmem>>, vector<8x8xf32>
      %cst_122 = arith.constant dense<0.000000e+00> : vector<8xf32>
      %264 = vector.multi_reduction <add>, %263, %cst_122 [1] : vector<8x8xf32> to vector<8xf32>
      %265 = vector.shape_cast %264 : vector<8xf32> to vector<8x1xf32>
      %cst_123 = arith.constant 1.250000e-01 : f32
      %266 = vector.broadcast %cst_123 : f32 to vector<8x1xf32>
      %267 = arith.mulf %265, %266 : vector<8x1xf32>
      %268 = vector.broadcast %267 : vector<8x1xf32> to vector<8x8xf32>
      %269 = arith.subf %263, %268 : vector<8x8xf32>
      %270 = arith.mulf %269, %269 : vector<8x8xf32>
      %cst_124 = arith.constant dense<0.000000e+00> : vector<8xf32>
      %271 = vector.multi_reduction <add>, %270, %cst_124 [1] : vector<8x8xf32> to vector<8xf32>
      %272 = vector.shape_cast %271 : vector<8xf32> to vector<8x1xf32>
      %cst_125 = arith.constant 0.142857149 : f32
      %273 = vector.broadcast %cst_125 : f32 to vector<8x1xf32>
      %274 = arith.mulf %272, %273 : vector<8x1xf32>
      %275 = math.sqrt %274 : vector<8x1xf32>
      %276 = vector.broadcast %224 : f32 to vector<8x1xf32>
      %277 = arith.mulf %254, %276 : vector<8x1xf32>
      %278 = vector.broadcast %225 : f32 to vector<8x1xf32>
      %279 = arith.addf %277, %278 : vector<8x1xf32>
      %cst_126 = arith.constant 0.166666672 : f32
      %280 = vector.broadcast %cst_126 : f32 to vector<8x1xf32>
      %281 = arith.mulf %279, %280 : vector<8x1xf32>
      %cst_127 = arith.constant 5.000000e-01 : f32
      %282 = vector.broadcast %cst_127 : f32 to vector<8x1xf32>
      %283 = arith.addf %281, %282 : vector<8x1xf32>
      %cst_128 = arith.constant 0.000000e+00 : f32
      %cst_129 = arith.constant 1.000000e+00 : f32
      %284 = vector.broadcast %cst_128 : f32 to vector<8x1xf32>
      %285 = arith.maximumf %284, %283 : vector<8x1xf32>
      %286 = vector.broadcast %cst_129 : f32 to vector<8x1xf32>
      %287 = arith.minimumf %286, %285 : vector<8x1xf32>
      %288 = vector.broadcast %224 : f32 to vector<8x1xf32>
      %289 = arith.mulf %267, %288 : vector<8x1xf32>
      %290 = vector.broadcast %225 : f32 to vector<8x1xf32>
      %291 = arith.addf %289, %290 : vector<8x1xf32>
      %cst_130 = arith.constant 0.166666672 : f32
      %292 = vector.broadcast %cst_130 : f32 to vector<8x1xf32>
      %293 = arith.mulf %291, %292 : vector<8x1xf32>
      %cst_131 = arith.constant 5.000000e-01 : f32
      %294 = vector.broadcast %cst_131 : f32 to vector<8x1xf32>
      %295 = arith.addf %293, %294 : vector<8x1xf32>
      %cst_132 = arith.constant 0.000000e+00 : f32
      %cst_133 = arith.constant 1.000000e+00 : f32
      %296 = vector.broadcast %cst_132 : f32 to vector<8x1xf32>
      %297 = arith.maximumf %296, %295 : vector<8x1xf32>
      %298 = vector.broadcast %cst_133 : f32 to vector<8x1xf32>
      %299 = arith.minimumf %298, %297 : vector<8x1xf32>
      %300 = vector.broadcast %226 : f32 to vector<8x1xf32>
      %301 = arith.mulf %262, %300 : vector<8x1xf32>
      %302 = vector.broadcast %227 : f32 to vector<8x1xf32>
      %303 = arith.addf %301, %302 : vector<8x1xf32>
      %cst_134 = arith.constant 0.166666672 : f32
      %304 = vector.broadcast %cst_134 : f32 to vector<8x1xf32>
      %305 = arith.mulf %303, %304 : vector<8x1xf32>
      %cst_135 = arith.constant 5.000000e-01 : f32
      %306 = vector.broadcast %cst_135 : f32 to vector<8x1xf32>
      %307 = arith.addf %305, %306 : vector<8x1xf32>
      %cst_136 = arith.constant 0.000000e+00 : f32
      %cst_137 = arith.constant 1.000000e+00 : f32
      %308 = vector.broadcast %cst_136 : f32 to vector<8x1xf32>
      %309 = arith.maximumf %308, %307 : vector<8x1xf32>
      %310 = vector.broadcast %cst_137 : f32 to vector<8x1xf32>
      %311 = arith.minimumf %310, %309 : vector<8x1xf32>
      %312 = tpu.reciprocal %311 {approx = true} : vector<8x1xf32> -> vector<8x1xf32>
      %313 = arith.mulf %311, %312 : vector<8x1xf32>
      %cst_138 = arith.constant 2.000000e+00 : f32
      %314 = vector.broadcast %cst_138 : f32 to vector<8x1xf32>
      %315 = arith.subf %314, %313 : vector<8x1xf32>
      %316 = arith.mulf %312, %315 : vector<8x1xf32>
      %317 = vector.broadcast %226 : f32 to vector<8x1xf32>
      %318 = arith.mulf %275, %317 : vector<8x1xf32>
      %319 = vector.broadcast %227 : f32 to vector<8x1xf32>
      %320 = arith.addf %318, %319 : vector<8x1xf32>
      %cst_139 = arith.constant 0.166666672 : f32
      %321 = vector.broadcast %cst_139 : f32 to vector<8x1xf32>
      %322 = arith.mulf %320, %321 : vector<8x1xf32>
      %cst_140 = arith.constant 5.000000e-01 : f32
      %323 = vector.broadcast %cst_140 : f32 to vector<8x1xf32>
      %324 = arith.addf %322, %323 : vector<8x1xf32>
      %cst_141 = arith.constant 0.000000e+00 : f32
      %cst_142 = arith.constant 1.000000e+00 : f32
      %325 = vector.broadcast %cst_141 : f32 to vector<8x1xf32>
      %326 = arith.maximumf %325, %324 : vector<8x1xf32>
      %327 = vector.broadcast %cst_142 : f32 to vector<8x1xf32>
      %328 = arith.minimumf %327, %326 : vector<8x1xf32>
      %329 = tpu.reciprocal %328 {approx = true} : vector<8x1xf32> -> vector<8x1xf32>
      %330 = arith.mulf %328, %329 : vector<8x1xf32>
      %cst_143 = arith.constant 2.000000e+00 : f32
      %331 = vector.broadcast %cst_143 : f32 to vector<8x1xf32>
      %332 = arith.subf %331, %330 : vector<8x1xf32>
      %333 = arith.mulf %329, %332 : vector<8x1xf32>
      %cst_144 = arith.constant dense<0.000000e+00> : vector<8x8xf32>
      %334 = tpu.matmul %249, %241, %cst_144 {dimension_numbers = #tpu.dot_dimension_numbers<[1], [1], [0], [0], [0, 0, 1, 0], [], []>} : vector<8x128xf32>, vector<8x128xf32>, vector<8x8xf32> -> vector<8x8xf32>
      %cst_145 = arith.constant 5.000000e-01 : f32
      %335 = arith.mulf %cst_145, %222 : f32
      %336 = tpu.iota {dimensions = array<i32: 1>} : vector<8x2xi32>
      %337 = tpu.iota {dimensions = array<i32: 1>} : vector<8x3xi32>
      %c0_i32_146 = arith.constant 0 : i32
      %338 = vector.broadcast %c0_i32_146 : i32 to vector<8x2xi32>
      %339 = arith.cmpi eq, %336, %338 : vector<8x2xi32>
      %340 = vector.broadcast %335 : f32 to vector<8x1xf32>
      %341 = arith.mulf %340, %333 : vector<8x1xf32>
      %342 = vector.broadcast %335 : f32 to vector<8x2xf32>
      %343 = vector.shape_cast %341 : vector<8x1xf32> to vector<8x1xf32>
      %344 = vector.broadcast %343 : vector<8x1xf32> to vector<8x2xf32>
      %345 = arith.select %339, %342, %344 : vector<8x2xi1>, vector<8x2xf32>
      %c0_i32_147 = arith.constant 0 : i32
      %346 = vector.broadcast %c0_i32_147 : i32 to vector<8x2xi32>
      %347 = arith.cmpi eq, %336, %346 : vector<8x2xi32>
      %cst_148 = arith.constant 1.000000e+00 : f32
      %348 = vector.shape_cast %316 : vector<8x1xf32> to vector<8x1xf32>
      %349 = vector.broadcast %348 : vector<8x1xf32> to vector<8x2xf32>
      %350 = vector.broadcast %cst_148 : f32 to vector<8x2xf32>
      %351 = arith.select %347, %349, %350 : vector<8x2xi1>, vector<8x2xf32>
      %c0_i32_149 = arith.constant 0 : i32
      %352 = vector.broadcast %c0_i32_149 : i32 to vector<8x3xi32>
      %353 = arith.cmpi eq, %337, %352 : vector<8x3xi32>
      %cst_150 = arith.constant 0.000000e+00 : f32
      %354 = vector.broadcast %335 : f32 to vector<8x3xf32>
      %355 = vector.broadcast %cst_150 : f32 to vector<8x3xf32>
      %356 = arith.select %353, %354, %355 : vector<8x3xi1>, vector<8x3xf32>
      %c1_i32 = arith.constant 1 : i32
      %357 = vector.broadcast %c1_i32 : i32 to vector<8x3xi32>
      %358 = arith.cmpi eq, %337, %357 : vector<8x3xi32>
      %359 = arith.mulf %299, %333 : vector<8x1xf32>
      %360 = vector.broadcast %335 : f32 to vector<8x1xf32>
      %361 = arith.mulf %360, %359 : vector<8x1xf32>
      %cst_151 = arith.constant 0.000000e+00 : f32
      %362 = vector.shape_cast %361 : vector<8x1xf32> to vector<8x1xf32>
      %363 = vector.broadcast %362 : vector<8x1xf32> to vector<8x3xf32>
      %364 = vector.broadcast %cst_151 : f32 to vector<8x3xf32>
      %365 = arith.select %358, %363, %364 : vector<8x3xi1>, vector<8x3xf32>
      %366 = arith.addf %356, %365 : vector<8x3xf32>
      %c2_i32 = arith.constant 2 : i32
      %367 = vector.broadcast %c2_i32 : i32 to vector<8x3xi32>
      %368 = arith.cmpi eq, %337, %367 : vector<8x3xi32>
      %cst_152 = arith.constant 0.000000e+00 : f32
      %369 = arith.subf %cst_152, %223 : f32
      %cst_153 = arith.constant 0.000000e+00 : f32
      %370 = vector.broadcast %369 : f32 to vector<8x3xf32>
      %371 = vector.broadcast %cst_153 : f32 to vector<8x3xf32>
      %372 = arith.select %368, %370, %371 : vector<8x3xi1>, vector<8x3xf32>
      %373 = arith.addf %366, %372 : vector<8x3xf32>
      %c0_i32_154 = arith.constant 0 : i32
      %374 = vector.broadcast %c0_i32_154 : i32 to vector<8x3xi32>
      %375 = arith.cmpi eq, %337, %374 : vector<8x3xi32>
      %376 = arith.mulf %287, %316 : vector<8x1xf32>
      %cst_155 = arith.constant 1.000000e+00 : f32
      %377 = vector.shape_cast %376 : vector<8x1xf32> to vector<8x1xf32>
      %378 = vector.broadcast %377 : vector<8x1xf32> to vector<8x3xf32>
      %379 = vector.broadcast %cst_155 : f32 to vector<8x3xf32>
      %380 = arith.select %375, %378, %379 : vector<8x3xi1>, vector<8x3xf32>
      %cst_156 = arith.constant dense<0.000000e+00> : vector<8x8xf32>
      %381 = tpu.matmul %345, %351, %cst_156 {dimension_numbers = #tpu.dot_dimension_numbers<[1], [1], [0], [0], [0, 0, 1, 0], [], []>} : vector<8x2xf32>, vector<8x2xf32>, vector<8x8xf32> -> vector<8x8xf32>
      %cst_157 = arith.constant dense<0.000000e+00> : vector<8x8xf32>
      %382 = tpu.matmul %373, %380, %cst_157 {dimension_numbers = #tpu.dot_dimension_numbers<[1], [1], [0], [0], [0, 0, 1, 0], [], []>} : vector<8x3xf32>, vector<8x3xf32>, vector<8x8xf32> -> vector<8x8xf32>
      %383 = arith.mulf %334, %381 : vector<8x8xf32>
      %384 = arith.subf %383, %382 : vector<8x8xf32>
      %cst_158 = arith.constant dense<0xFF800000> : vector<8xf32>
      %385 = vector.multi_reduction <maximumf>, %384, %cst_158 [1] : vector<8x8xf32> to vector<8xf32>
      %386 = vector.shape_cast %385 : vector<8xf32> to vector<8x1xf32>
      %387 = vector.broadcast %386 : vector<8x1xf32> to vector<8x8xf32>
      %388 = arith.subf %384, %387 : vector<8x8xf32>
      %389 = math.exp %388 : vector<8x8xf32>
      %cst_159 = arith.constant dense<0.000000e+00> : vector<8xf32>
      %390 = vector.multi_reduction <add>, %389, %cst_159 [1] : vector<8x8xf32> to vector<8xf32>
      %391 = vector.shape_cast %390 : vector<8xf32> to vector<8x1xf32>
      %392 = math.log %391 : vector<8x1xf32>
      %393 = arith.addf %386, %392 : vector<8x1xf32>
      %394 = arith.mulf %249, %241 : vector<8x128xf32>
      %cst_160 = arith.constant dense<0.000000e+00> : vector<8xf32>
      %395 = vector.multi_reduction <add>, %394, %cst_160 [1] : vector<8x128xf32> to vector<8xf32>
      %396 = vector.shape_cast %395 : vector<8xf32> to vector<8x1xf32>
      %397 = arith.subf %396, %287 : vector<8x1xf32>
      %398 = arith.mulf %397, %316 : vector<8x1xf32>
      %399 = arith.subf %396, %299 : vector<8x1xf32>
      %400 = arith.mulf %399, %333 : vector<8x1xf32>
      %401 = arith.addf %398, %400 : vector<8x1xf32>
      %402 = vector.broadcast %335 : f32 to vector<8x1xf32>
      %403 = arith.mulf %402, %401 : vector<8x1xf32>
      %404 = vector.broadcast %223 : f32 to vector<8x1xf32>
      %405 = arith.addf %403, %404 : vector<8x1xf32>
      %406 = arith.subf %393, %405 : vector<8x1xf32>
      %cst_161 = arith.constant dense<0.000000e+00> : vector<1xf32>
      %407 = vector.multi_reduction <add>, %406, %cst_161 [0] : vector<8x1xf32> to vector<1xf32>
      %408 = vector.shape_cast %407 : vector<1xf32> to vector<1x1xf32>
      %cst_162 = arith.constant 1.250000e-01 : f32
      %409 = vector.broadcast %cst_162 : f32 to vector<1x1xf32>
      %410 = arith.mulf %408, %409 : vector<1x1xf32>
      %c0_163 = arith.constant 0 : index
      %c0_164 = arith.constant 0 : index
      %411 = vector.load %arg4[%c0_163, %c0_164] : memref<1x1xf32, #tpu.memory_space<vmem>>, vector<1x1xf32>
      tpu.vector_store %arg4[%c0_163, %c0_164], %410 {strides = array<i32>} : memref<1x1xf32, #tpu.memory_space<vmem>>, vector<1x1xf32>,
    } else {
    }
    return
  }
  func.func @transform_0(%arg0: i32) -> i32 {
    %c0_i32 = arith.constant 0 : i32
    %c0_i32_0 = arith.constant 0 : i32
    return %c0_i32 : i32
  }
  func.func @transform_1(%arg0: i32) -> (i32, i32, i32) {
    %c0_i32 = arith.constant 0 : i32
    %c0_i32_0 = arith.constant 0 : i32
    %c0_i32_1 = arith.constant 0 : i32
    %c0_i32_2 = arith.constant 0 : i32
    return %c0_i32, %c0_i32_0, %c0_i32_1 : i32, i32, i32
  }
  func.func @transform_2(%arg0: i32) -> (i32, i32, i32) {
    %c0_i32 = arith.constant 0 : i32
    %c0_i32_0 = arith.constant 0 : i32
    %c0_i32_1 = arith.constant 0 : i32
    return %c0_i32, %c0_i32_0, %arg0 : i32, i32, i32
  }
  func.func @transform_3(%arg0: i32) -> (i32, i32) {
    %c0_i32 = arith.constant 0 : i32
    %c0_i32_0 = arith.constant 0 : i32
    %c0_i32_1 = arith.constant 0 : i32
    return %c0_i32, %c0_i32_0 : i32, i32
  }
}

</mosaic_0001>

<llo_original>
// kernel: tpu_custom_call.1
$region0: #{tpu_custom_call.1}
  #allocation0 [shape = 'u32[]', space=smem, size = 0x4, offset = 0x4, fixed_abs, tag = 'smem constant byte address 0x4 - core index']
  #allocation1 [shape = 'u32[144,128]{1,0:T(1,128)}', space=vmem, size = 0x12000, scoped, tag = 'internal scratch']
  #allocation2 [shape = 'f32[8,8]{1,0:T(8,128)}', space=vmem, size = 0x1000, scoped, tag = 'scratch operand']
  #allocation3 [shape = 'f32[8,8]{1,0:T(8,128)}', space=vmem, size = 0x1000, scoped, tag = 'scratch operand']
  %s0 = inlined_call_operand.hbm [shape: f32[6], index: 0, kind: input, shape index: {}]
  %s1 = inlined_call_operand.hbm [shape: f32[2,8,128], index: 1, kind: input, shape index: {}]
  %s2 = inlined_call_operand.hbm [shape: f32[2,8,128], index: 2, kind: input, shape index: {}]
  %s3 = inlined_call_operand.hbm [shape: f32[1,1], index: 3, kind: output, shape index: {}]
  %s4 = sld [smem:[#allocation0]]
  $region42: #{tpu_custom_call.1} parent=0
    _
  %s6 = ssub.s32 1, %s4
  %s7 = scalar_select 0, %s6, %s4
  $region1: #{tpu_custom_call.1} parent=0
    #allocation4 [shape = 'u8[512]{0}', space=smem, size = 0x200, scoped, tag = 'input window, operand 0, single buffered']
    #allocation5 [shape = 's32[1]{0}', space=sflag, size = 0x4, scoped, tag = 'scoped memory for tpu_custom_call.1']
    #allocation6 [shape = 's32[1]{0}', space=sflag, size = 0x4, scoped, tag = 'scoped memory for tpu_custom_call.1']
    #allocation7 [shape = 's32[1]{0}', space=sflag, size = 0x4, scoped, tag = 'scoped memory for tpu_custom_call.1']
    #allocation8 [shape = 'u8[8192]{0}', space=vmem, size = 0x2000, scoped, tag = 'input window, operand 1, single buffered']
    #allocation9 [shape = 'u8[8192]{0}', space=vmem, size = 0x2000, scoped, tag = 'input window, operand 2, single buffered']
    #allocation10 [shape = 's32[1]{0}', space=sflag, size = 0x4, scoped, tag = 'scoped memory for tpu_custom_call.1']
    #allocation11 [shape = 'u8[512]{0}', space=vmem, size = 0x400, scoped, tag = 'output window, operand 0, single buffered']
    %8 = vsyncpa [#allocation7], 0
    %9 = vsyncpa [#allocation5], 0
    %10 = vsyncpa [#allocation10], 0
    %11 = vsyncpa [#allocation6], 0
    // Predicated region
    $region2: #{tpu_custom_call.1} parent=1 // pred_check
      _
    $region3: #{tpu_custom_call.1} parent=1 // pred_check_branch
      %13 = sbr.rel (0) target = $region5
    $region4: #{tpu_custom_call.1} parent=1 // pred_region
      %s15 = ssub.s32 16, 16
      %16 = vsyncadd [#allocation7], %s15
      %19 = dma.hbm_to_smem %s0, 16, [#allocation4], [#allocation7]
    $region5: #{tpu_custom_call.1} parent=1 // pred_fallthru
      _
    // Predicated region
    $region6: #{tpu_custom_call.1} parent=1 // pred_check
      _
    $region7: #{tpu_custom_call.1} parent=1 // pred_check_branch
      %21 = sbr.rel (0) target = $region9
    $region8: #{tpu_custom_call.1} parent=1 // pred_region
      %s23 = ssub.s32 256, 256
      %24 = vsyncadd [#allocation5], %s23
      %s25 = sshll.u32 [#allocation8], 4
      %s26 = int_to_ptr.vmem [resolvable:$true] %s25
      %31 = dma.hbm_to_vmem [thread:$0]  %s1, 256, %s26, [#allocation5], 128, 128, 8
    $region9: #{tpu_custom_call.1} parent=1 // pred_fallthru
      _
    // Predicated region
    $region10: #{tpu_custom_call.1} parent=1 // pred_check
      _
    $region11: #{tpu_custom_call.1} parent=1 // pred_check_branch
      %33 = sbr.rel (0) target = $region13
    $region12: #{tpu_custom_call.1} parent=1 // pred_region
      %s35 = ssub.s32 256, 256
      %36 = vsyncadd [#allocation10], %s35
      %s37 = sshll.u32 [#allocation9], 4
      %s38 = int_to_ptr.vmem [resolvable:$true] %s37
      %43 = dma.hbm_to_vmem [thread:$0]  %s2, 256, %s38, [#allocation10], 128, 128, 8
    $region13: #{tpu_custom_call.1} parent=1 // pred_fallthru
      _
    // Predicated region
    $region14: #{tpu_custom_call.1} parent=1 // pred_check
      _
    $region15: #{tpu_custom_call.1} parent=1 // pred_check_branch
      %45 = sbr.rel (0) target = $region17
    $region16: #{tpu_custom_call.1} parent=1 // pred_region
      %46 = dma.done [#allocation7], 16
    $region17: #{tpu_custom_call.1} parent=1 // pred_fallthru
      _
    // Predicated region
    $region18: #{tpu_custom_call.1} parent=1 // pred_check
      _
    $region19: #{tpu_custom_call.1} parent=1 // pred_check_branch
      %48 = sbr.rel (0) target = $region21
    $region20: #{tpu_custom_call.1} parent=1 // pred_region
      %49 = dma.done [#allocation5], 256
    $region21: #{tpu_custom_call.1} parent=1 // pred_fallthru
      _
    // Predicated region
    $region22: #{tpu_custom_call.1} parent=1 // pred_check
      _
    $region23: #{tpu_custom_call.1} parent=1 // pred_check_branch
      %51 = sbr.rel (0) target = $region25
    $region24: #{tpu_custom_call.1} parent=1 // pred_region
      %52 = dma.done [#allocation10], 256
    $region25: #{tpu_custom_call.1} parent=1 // pred_fallthru
      _
    %53 = sfence
    %p54 = scmp.eq.s32.totalorder 0, 0
    // Predicated region
    $region26: #{tpu_custom_call.1} parent=1 // pred_check
      %p55 = pneg %p54
    $region27: #{tpu_custom_call.1} parent=1 // pred_check_branch
      %57 = sbr.rel (%p55) target = $region29
    $region28: #{tpu_custom_call.1} parent=1 // pred_region
      %vm58 = vcmask 64512
      %59 = vst.msk [vmem:[#allocation2] sm:$0xff] %vm58, -1e+30
      %60 = vst.msk [vmem:[#allocation3] sm:$0xff] %vm58, -1e+30
    $region29: #{tpu_custom_call.1} parent=1 // pred_fallthru
      _
    %s61 = scalar_lea.vmem [#allocation9], 8
    %v62 = vld [vmem:[%s61] sm:$0xff]
    %v63 = vld [vmem:[#allocation9] sm:$0xff]
    %v64 = vld [vmem:[#allocation2] sm:$0xff]
    %65 = vmax.xlane.f32.xlu0 %v62
    %v66 = vpop.xlane.xlu0 %65
    %vm67 = vcmask 64512
    %v68 = vsel %vm67, %v64, -inf
    %69 = vmax.xlane.f32.xlu0 %v68
    %v70 = vpop.xlane.xlu0 %69
    %v71 = vmax.f32 %v66, %v70
    %vm72 = vcmask 7168
    %73 = vst.msk [vmem:[#allocation2] sm:$0xff] %vm72, %v71
    %vm74 = vcmp.eq.f32.partialorder %v62, %v71
    %v75 = vsel %vm74, -1e+30, %v62
    %vm76 = vcmp.eq.f32.partialorder %v64, %v71
    %v77 = vsel %vm76, -1e+30, %v64
    %78 = vmax.xlane.f32.xlu0 %v75
    %v79 = vpop.xlane.xlu0 %78
    %v80 = vsel %vm67, %v77, -inf
    %81 = vmax.xlane.f32.xlu0 %v80
    %v82 = vpop.xlane.xlu0 %81
    %v83 = vmax.f32 %v79, %v82
    %vm84 = vcmask 15368
    %85 = vst.msk [vmem:[#allocation2] sm:$0xff] %vm84, %v83
    %vm86 = vcmp.eq.f32.partialorder %v75, %v83
    %v87 = vsel %vm86, -1e+30, %v75
    %vm88 = vcmp.eq.f32.partialorder %v77, %v83
    %v89 = vsel %vm88, -1e+30, %v77
    %90 = vmax.xlane.f32.xlu0 %v87
    %v91 = vpop.xlane.xlu0 %90
    %v92 = vsel %vm67, %v89, -inf
    %93 = vmax.xlane.f32.xlu0 %v92
    %v94 = vpop.xlane.xlu0 %93
    %v95 = vmax.f32 %v91, %v94
    %vm96 = vcmask 23568
    %97 = vst.msk [vmem:[#allocation2] sm:$0xff] %vm96, %v95
    %vm98 = vcmp.eq.f32.partialorder %v87, %v95
    %v99 = vsel %vm98, -1e+30, %v87
    %vm100 = vcmp.eq.f32.partialorder %v89, %v95
    %v101 = vsel %vm100, -1e+30, %v89
    %102 = vmax.xlane.f32.xlu0 %v99
    %v103 = vpop.xlane.xlu0 %102
    %v104 = vsel %vm67, %v101, -inf
    %105 = vmax.xlane.f32.xlu0 %v104
    %v106 = vpop.xlane.xlu0 %105
    %v107 = vmax.f32 %v103, %v106
    %vm108 = vcmask 31768
    %109 = vst.msk [vmem:[#allocation2] sm:$0xff] %vm108, %v107
    %vm110 = vcmp.eq.f32.partialorder %v99, %v107
    %v111 = vsel %vm110, -1e+30, %v99
    %vm112 = vcmp.eq.f32.partialorder %v101, %v107
    %v113 = vsel %vm112, -1e+30, %v101
    %114 = vmax.xlane.f32.xlu0 %v111
    %v115 = vpop.xlane.xlu0 %114
    %v116 = vsel %vm67, %v113, -inf
    %117 = vmax.xlane.f32.xlu0 %v116
    %v118 = vpop.xlane.xlu0 %117
    %v119 = vmax.f32 %v115, %v118
    %vm120 = vcmask 39968
    %121 = vst.msk [vmem:[#allocation2] sm:$0xff] %vm120, %v119
    %vm122 = vcmp.eq.f32.partialorder %v111, %v119
    %v123 = vsel %vm122, -1e+30, %v111
    %vm124 = vcmp.eq.f32.partialorder %v113, %v119
    %v125 = vsel %vm124, -1e+30, %v113
    %126 = vmax.xlane.f32.xlu0 %v123
    %v127 = vpop.xlane.xlu0 %126
    %v128 = vsel %vm67, %v125, -inf
    %129 = vmax.xlane.f32.xlu0 %v128
    %v130 = vpop.xlane.xlu0 %129
    %v131 = vmax.f32 %v127, %v130
    %vm132 = vcmask 48168
    %133 = vst.msk [vmem:[#allocation2] sm:$0xff] %vm132, %v131
    %vm134 = vcmp.eq.f32.partialorder %v123, %v131
    %v135 = vsel %vm134, -1e+30, %v123
    %vm136 = vcmp.eq.f32.partialorder %v125, %v131
    %v137 = vsel %vm136, -1e+30, %v125
    %138 = vmax.xlane.f32.xlu0 %v135
    %v139 = vpop.xlane.xlu0 %138
    %v140 = vsel %vm67, %v137, -inf
    %141 = vmax.xlane.f32.xlu0 %v140
    %v142 = vpop.xlane.xlu0 %141
    %v143 = vmax.f32 %v139, %v142
    %vm144 = vcmask 56368
    %145 = vst.msk [vmem:[#allocation2] sm:$0xff] %vm144, %v143
    %vm146 = vcmp.eq.f32.partialorder %v135, %v143
    %v147 = vsel %vm146, -1e+30, %v135
    %vm148 = vcmp.eq.f32.partialorder %v137, %v143
    %v149 = vsel %vm148, -1e+30, %v137
    %150 = vmax.xlane.f32.xlu0 %v147
    %v151 = vpop.xlane.xlu0 %150
    %v152 = vsel %vm67, %v149, -inf
    %153 = vmax.xlane.f32.xlu0 %v152
    %v154 = vpop.xlane.xlu0 %153
    %v155 = vmax.f32 %v151, %v154
    %vm156 = vcmask 64568
    %157 = vst.msk [vmem:[#allocation2] sm:$0xff] %vm156, %v155
    %v158 = vld [vmem:[#allocation3] sm:$0xff]
    %159 = vmax.xlane.f32.xlu0 %v63
    %v160 = vpop.xlane.xlu0 %159
    %v161 = vsel %vm67, %v158, -inf
    %162 = vmax.xlane.f32.xlu0 %v161
    %v163 = vpop.xlane.xlu0 %162
    %v164 = vmax.f32 %v160, %v163
    %165 = vst.msk [vmem:[#allocation3] sm:$0xff] %vm72, %v164
    %vm166 = vcmp.eq.f32.partialorder %v63, %v164
    %v167 = vsel %vm166, -1e+30, %v63
    %vm168 = vcmp.eq.f32.partialorder %v158, %v164
    %v169 = vsel %vm168, -1e+30, %v158
    %170 = vmax.xlane.f32.xlu0 %v167
    %v171 = vpop.xlane.xlu0 %170
    %v172 = vsel %vm67, %v169, -inf
    %173 = vmax.xlane.f32.xlu0 %v172
    %v174 = vpop.xlane.xlu0 %173
    %v175 = vmax.f32 %v171, %v174
    %176 = vst.msk [vmem:[#allocation3] sm:$0xff] %vm84, %v175
    %vm177 = vcmp.eq.f32.partialorder %v167, %v175
    %v178 = vsel %vm177, -1e+30, %v167
    %vm179 = vcmp.eq.f32.partialorder %v169, %v175
    %v180 = vsel %vm179, -1e+30, %v169
    %181 = vmax.xlane.f32.xlu0 %v178
    %v182 = vpop.xlane.xlu0 %181
    %v183 = vsel %vm67, %v180, -inf
    %184 = vmax.xlane.f32.xlu0 %v183
    %v185 = vpop.xlane.xlu0 %184
    %v186 = vmax.f32 %v182, %v185
    %187 = vst.msk [vmem:[#allocation3] sm:$0xff] %vm96, %v186
    %vm188 = vcmp.eq.f32.partialorder %v178, %v186
    %v189 = vsel %vm188, -1e+30, %v178
    %vm190 = vcmp.eq.f32.partialorder %v180, %v186
    %v191 = vsel %vm190, -1e+30, %v180
    %192 = vmax.xlane.f32.xlu0 %v189
    %v193 = vpop.xlane.xlu0 %192
    %v194 = vsel %vm67, %v191, -inf
    %195 = vmax.xlane.f32.xlu0 %v194
    %v196 = vpop.xlane.xlu0 %195
    %v197 = vmax.f32 %v193, %v196
    %198 = vst.msk [vmem:[#allocation3] sm:$0xff] %vm108, %v197
    %vm199 = vcmp.eq.f32.partialorder %v189, %v197
    %v200 = vsel %vm199, -1e+30, %v189
    %vm201 = vcmp.eq.f32.partialorder %v191, %v197
    %v202 = vsel %vm201, -1e+30, %v191
    %203 = vmax.xlane.f32.xlu0 %v200
    %v204 = vpop.xlane.xlu0 %203
    %v205 = vsel %vm67, %v202, -inf
    %206 = vmax.xlane.f32.xlu0 %v205
    %v207 = vpop.xlane.xlu0 %206
    %v208 = vmax.f32 %v204, %v207
    %209 = vst.msk [vmem:[#allocation3] sm:$0xff] %vm120, %v208
    %vm210 = vcmp.eq.f32.partialorder %v200, %v208
    %v211 = vsel %vm210, -1e+30, %v200
    %vm212 = vcmp.eq.f32.partialorder %v202, %v208
    %v213 = vsel %vm212, -1e+30, %v202
    %214 = vmax.xlane.f32.xlu0 %v211
    %v215 = vpop.xlane.xlu0 %214
    %v216 = vsel %vm67, %v213, -inf
    %217 = vmax.xlane.f32.xlu0 %v216
    %v218 = vpop.xlane.xlu0 %217
    %v219 = vmax.f32 %v215, %v218
    %220 = vst.msk [vmem:[#allocation3] sm:$0xff] %vm132, %v219
    %vm221 = vcmp.eq.f32.partialorder %v211, %v219
    %v222 = vsel %vm221, -1e+30, %v211
    %vm223 = vcmp.eq.f32.partialorder %v213, %v219
    %v224 = vsel %vm223, -1e+30, %v213
    %225 = vmax.xlane.f32.xlu0 %v222
    %v226 = vpop.xlane.xlu0 %225
    %v227 = vsel %vm67, %v224, -inf
    %228 = vmax.xlane.f32.xlu0 %v227
    %v229 = vpop.xlane.xlu0 %228
    %v230 = vmax.f32 %v226, %v229
    %231 = vst.msk [vmem:[#allocation3] sm:$0xff] %vm144, %v230
    %vm232 = vcmp.eq.f32.partialorder %v222, %v230
    %v233 = vsel %vm232, -1e+30, %v222
    %vm234 = vcmp.eq.f32.partialorder %v224, %v230
    %v235 = vsel %vm234, -1e+30, %v224
    %236 = vmax.xlane.f32.xlu0 %v233
    %v237 = vpop.xlane.xlu0 %236
    %v238 = vsel %vm67, %v235, -inf
    %239 = vmax.xlane.f32.xlu0 %v238
    %v240 = vpop.xlane.xlu0 %239
    %v241 = vmax.f32 %v237, %v240
    %242 = vst.msk [vmem:[#allocation3] sm:$0xff] %vm156, %v241
    // Predicated region
    $region30: #{tpu_custom_call.1} parent=1 // pred_check
      %p243 = pneg %p54
    $region31: #{tpu_custom_call.1} parent=1 // pred_check_branch
      %245 = sbr.rel (%p243) target = $region33
    $region32: #{tpu_custom_call.1} parent=1 // pred_region
      %s246 = sld [smem:[#allocation4]]
      %s247 = sld [smem:[#allocation4 + $0x1]]
      %s248 = sld [smem:[#allocation4 + $0x2]]
      %s249 = sld [smem:[#allocation4 + $0x3]]
      %s250 = sld [smem:[#allocation4 + $0x4]]
      %s251 = sld [smem:[#allocation4 + $0x5]]
      %s252 = scalar_lea.vmem [#allocation8], 8
      %v253 = vld [vmem:[%s252] sm:$0xff]
      %v254 = vld [vmem:[#allocation8] sm:$0xff]
      %v255 = vmul.f32 %v253, %v253
      %256 = vadd.xlane.f32.xlu0 %v255
      %v257 = vpop.xlane.xlu0 %256
      %v258 = vmax.f32 %v257, 1e-16
      %v259 = vrsqrt.pop %v258
      %v260 = vmul.f32 %v253, %v259
      %v261 = vmul.f32 %v254, %v254
      %262 = vadd.xlane.f32.xlu0 %v261
      %v263 = vpop.xlane.xlu0 %262
      %v264 = vmax.f32 %v263, 1e-16
      %v265 = vrsqrt.pop %v264
      %v266 = vmul.f32 %v254, %v265
      %v267 = vld [vmem:[#allocation2] sm:$0xff]
      %v268 = vsel %vm67, %v267, 0.0
      %269 = vadd.xlane.f32.xlu0 %v268
      %v270 = vpop.xlane.xlu0 %269
      %v271 = vmul.f32 %v270, 0.125
      %v272 = vsub.f32 %v267, %v271
      %v273 = vmul.f32 %v272, %v272
      %v274 = vsel %vm67, %v273, 0.0
      %275 = vadd.xlane.f32.xlu0 %v274
      %v276 = vpop.xlane.xlu0 %275
      %v277 = vmul.f32 %v276, 0.14285715
      %v278 = vrsqrt.pop %v277
      %v279 = vmul.f32 %v277, %v278
      %vm280 = vcmp.eq.f32.partialorder %v277, inf
      %v281 = vsel %vm280, %v277, %v279
      %vm282 = vcmp.eq.f32.partialorder %v277, 0.0
      %v283 = vand.u32 %v277, 2147483648
      %v284 = vsel %vm282, %v283, %v281
      %v285 = vld [vmem:[#allocation3] sm:$0xff]
      %v286 = vsel %vm67, %v285, 0.0
      %287 = vadd.xlane.f32.xlu0 %v286
      %v288 = vpop.xlane.xlu0 %287
      %v289 = vmul.f32 %v288, 0.125
      %v290 = vsub.f32 %v285, %v289
      %v291 = vmul.f32 %v290, %v290
      %v292 = vsel %vm67, %v291, 0.0
      %293 = vadd.xlane.f32.xlu0 %v292
      %v294 = vpop.xlane.xlu0 %293
      %v295 = vmul.f32 %v294, 0.14285715
      %v296 = vrsqrt.pop %v295
      %v297 = vmul.f32 %v295, %v296
      %vm298 = vcmp.eq.f32.partialorder %v295, inf
      %v299 = vsel %vm298, %v295, %v297
      %vm300 = vcmp.eq.f32.partialorder %v295, 0.0
      %v301 = vand.u32 %v295, 2147483648
      %v302 = vsel %vm300, %v301, %v299
      %v303 = vstv %s248
      %v304 = vmul.f32 %v271, %v303
      %v305 = vstv %s249
      %v306 = vadd.f32 %v304, %v305
      %v307 = vmul.f32 %v306, 0.16666667
      %v308 = vadd.f32 %v307, 0.5
      %v309 = vmax.f32 %v308, 0.0
      %v310 = vmin.f32 %v309, 1.0
      %v311 = vmul.f32 %v289, %v303
      %v312 = vadd.f32 %v311, %v305
      %v313 = vmul.f32 %v312, 0.16666667
      %v314 = vadd.f32 %v313, 0.5
      %v315 = vmax.f32 %v314, 0.0
      %v316 = vmin.f32 %v315, 1.0
      %v317 = vstv %s250
      %v318 = vmul.f32 %v284, %v317
      %v319 = vstv %s251
      %v320 = vadd.f32 %v318, %v319
      %v321 = vmul.f32 %v320, 0.16666667
      %v322 = vadd.f32 %v321, 0.5
      %v323 = vmax.f32 %v322, 0.0
      %v324 = vmin.f32 %v323, 1.0
      %v325 = vrcp.pop %v324
      %v326 = vmul.f32 %v324, %v325
      %v327 = vsub.f32 2.0, %v326
      %v328 = vmul.f32 %v325, %v327
      %v329 = vmul.f32 %v302, %v317
      %v330 = vadd.f32 %v329, %v319
      %v331 = vmul.f32 %v330, 0.16666667
      %v332 = vadd.f32 %v331, 0.5
      %v333 = vmax.f32 %v332, 0.0
      %v334 = vmin.f32 %v333, 1.0
      %v335 = vrcp.pop %v334
      %v336 = vmul.f32 %v334, %v335
      %v337 = vsub.f32 2.0, %v336
      %v338 = vmul.f32 %v335, %v337
      %339 = vmatprep.subr.mxu0 0.0
      %340 = vmatpush1.xpose.msra.mxu0 0.0
      %341 = vmatprep.subr.mxu0 0.0
      %342 = vmatpush1.xpose.msra.mxu0 0.0
      %343 = vmatprep.subr.mxu0 0.0
      %344 = vmatpush1.xpose.msra.mxu0 0.0
      %345 = vmatprep.subr.mxu0 0.0
      %346 = vmatpush1.xpose.msra.mxu0 0.0
      %347 = vmatprep.subr.mxu0 0.0
      %348 = vmatpush1.xpose.msra.mxu0 0.0
      %349 = vmatprep.subr.mxu0 0.0
      %350 = vmatpush1.xpose.msra.mxu0 0.0
      %351 = vmatprep.subr.mxu0 0.0
      %352 = vmatpush1.xpose.msra.mxu0 0.0
      %353 = vmatprep.subr.mxu0 0.0
      %354 = vmatpush1.xpose.msra.mxu0 0.0
      %355 = vmatprep.subr.mxu0 0.0
      %356 = vmatpush1.xpose.msra.mxu0 0.0
      %357 = vmatprep.subr.mxu0 0.0
      %358 = vmatpush1.xpose.msra.mxu0 0.0
      %359 = vmatprep.subr.mxu0 0.0
      %360 = vmatpush1.xpose.msra.mxu0 0.0
      %361 = vmatprep.subr.mxu0 0.0
      %362 = vmatpush1.xpose.msra.mxu0 0.0
      %363 = vmatprep.subr.mxu0 0.0
      %364 = vmatpush1.xpose.msra.mxu0 0.0
      %365 = vmatprep.subr.mxu0 0.0
      %366 = vmatpush1.xpose.msra.mxu0 0.0
      %367 = vmatprep.subr.mxu0 0.0
      %368 = vmatpush1.xpose.msra.mxu0 0.0
      %369 = vmatprep.subr.mxu0 0.0
      %370 = vmatpush1.xpose.msra.mxu0 %v260
      %371 = vmatprep.subr.mxu0 0.0
      %372 = vmatpush2.xpose.msra.mxu0 0.0
      %373 = vmatprep.subr.mxu0 0.0
      %374 = vmatpush2.xpose.msra.mxu0 0.0
      %375 = vmatprep.subr.mxu0 0.0
      %376 = vmatpush2.xpose.msra.mxu0 0.0
      %377 = vmatprep.subr.mxu0 0.0
      %378 = vmatpush2.xpose.msra.mxu0 0.0
      %379 = vmatprep.subr.mxu0 0.0
      %380 = vmatpush2.xpose.msra.mxu0 0.0
      %381 = vmatprep.subr.mxu0 0.0
      %382 = vmatpush2.xpose.msra.mxu0 0.0
      %383 = vmatprep.subr.mxu0 0.0
      %384 = vmatpush2.xpose.msra.mxu0 0.0
      %385 = vmatprep.subr.mxu0 0.0
      %386 = vmatpush2.xpose.msra.mxu0 0.0
      %387 = vmatprep.subr.mxu0 0.0
      %388 = vmatpush2.xpose.msra.mxu0 0.0
      %389 = vmatprep.subr.mxu0 0.0
      %390 = vmatpush2.xpose.msra.mxu0 0.0
      %391 = vmatprep.subr.mxu0 0.0
      %392 = vmatpush2.xpose.msra.mxu0 0.0
      %393 = vmatprep.subr.mxu0 0.0
      %394 = vmatpush2.xpose.msra.mxu0 0.0
      %395 = vmatprep.subr.mxu0 0.0
      %396 = vmatpush2.xpose.msra.mxu0 0.0
      %397 = vmatprep.subr.mxu0 0.0
      %398 = vmatpush2.xpose.msra.mxu0 0.0
      %399 = vmatprep.subr.mxu0 0.0
      %400 = vmatpush2.xpose.msra.mxu0 0.0
      %401 = vmatprep.subr.mxu0 0.0
      %402 = vmatpush2.xpose.msra.mxu0 0.0
      %403 = vmatprep.mubr.f32.mxu0 0.0
      %404 = vmatmul.mubr.f32.gmra.mxu0 %v266
      %v405 = vpop.f32.mrf.mxu0
      %v406 = vadd.f32 0.0, %v405
      %v407 = vpop.f32.mrf.mxu0
      %408 = vdwg.mxu0
      %s409 = smul.f32 %s246, 0.5
      %v410 = vlaneseq
      %v411 = vand.u32 %v410, 127
      %vm412 = vcmp.eq.s32.totalorder %v411, 0
      %v413 = vstv %s409
      %v414 = vmul.f32 %v413, %v338
      %v415 = vsel %vm412, %v413, %v414
      %v416 = vsel %vm412, %v328, 1.0
      %v417 = vsel %vm412, %v413, 0.0
      %vm418 = vcmp.eq.s32.totalorder %v411, 1
      %v419 = vmul.f32 %v316, %v338
      %v420 = vmul.f32 %v413, %v419
      %v421 = vsel %vm418, %v420, 0.0
      %v422 = vadd.f32 %v417, %v421
      %vm423 = vcmp.eq.s32.totalorder %v411, 2
      %s424 = ssub.f32 0.0, %s247
      %v425 = vstv %s424
      %v426 = vsel %vm423, %v425, 0.0
      %v427 = vadd.f32 %v422, %v426
      %v428 = vmul.f32 %v310, %v328
      %v429 = vsel %vm412, %v428, 1.0
      %vm430 = vcmask 15360
      %v432 = vsel %vm430, %v415, 0
      %v435 = vsel %vm430, %v416, 0
      %437 = vmatprep.subr.mxu0 0.0
      %438 = vmatpush1.xpose.msra.mxu0 0.0
      %439 = vmatprep.subr.mxu0 0.0
      %440 = vmatpush1.xpose.msra.mxu0 0.0
      %441 = vmatprep.subr.mxu0 0.0
      %442 = vmatpush1.xpose.msra.mxu0 0.0
      %443 = vmatprep.subr.mxu0 0.0
      %444 = vmatpush1.xpose.msra.mxu0 0.0
      %445 = vmatprep.subr.mxu0 0.0
      %446 = vmatpush1.xpose.msra.mxu0 0.0
      %447 = vmatprep.subr.mxu0 0.0
      %448 = vmatpush1.xpose.msra.mxu0 0.0
      %449 = vmatprep.subr.mxu0 0.0
      %450 = vmatpush1.xpose.msra.mxu0 0.0
      %451 = vmatprep.subr.mxu0 0.0
      %452 = vmatpush1.xpose.msra.mxu0 0.0
      %453 = vmatprep.subr.mxu0 0.0
      %454 = vmatpush1.xpose.msra.mxu0 0.0
      %455 = vmatprep.subr.mxu0 0.0
      %456 = vmatpush1.xpose.msra.mxu0 0.0
      %457 = vmatprep.subr.mxu0 0.0
      %458 = vmatpush1.xpose.msra.mxu0 0.0
      %459 = vmatprep.subr.mxu0 0.0
      %460 = vmatpush1.xpose.msra.mxu0 0.0
      %461 = vmatprep.subr.mxu0 0.0
      %462 = vmatpush1.xpose.msra.mxu0 0.0
      %463 = vmatprep.subr.mxu0 0.0
      %464 = vmatpush1.xpose.msra.mxu0 0.0
      %465 = vmatprep.subr.mxu0 0.0
      %466 = vmatpush1.xpose.msra.mxu0 0.0
      %467 = vmatprep.subr.mxu0 0.0
      %468 = vmatpush1.xpose.msra.mxu0 %v435
      %469 = vmatprep.subr.mxu0 0.0
      %470 = vmatpush2.xpose.msra.mxu0 0.0
      %471 = vmatprep.subr.mxu0 0.0
      %472 = vmatpush2.xpose.msra.mxu0 0.0
      %473 = vmatprep.subr.mxu0 0.0
      %474 = vmatpush2.xpose.msra.mxu0 0.0
      %475 = vmatprep.subr.mxu0 0.0
      %476 = vmatpush2.xpose.msra.mxu0 0.0
      %477 = vmatprep.subr.mxu0 0.0
      %478 = vmatpush2.xpose.msra.mxu0 0.0
      %479 = vmatprep.subr.mxu0 0.0
      %480 = vmatpush2.xpose.msra.mxu0 0.0
      %481 = vmatprep.subr.mxu0 0.0
      %482 = vmatpush2.xpose.msra.mxu0 0.0
      %483 = vmatprep.subr.mxu0 0.0
      %484 = vmatpush2.xpose.msra.mxu0 0.0
      %485 = vmatprep.subr.mxu0 0.0
      %486 = vmatpush2.xpose.msra.mxu0 0.0
      %487 = vmatprep.subr.mxu0 0.0
      %488 = vmatpush2.xpose.msra.mxu0 0.0
      %489 = vmatprep.subr.mxu0 0.0
      %490 = vmatpush2.xpose.msra.mxu0 0.0
      %491 = vmatprep.subr.mxu0 0.0
      %492 = vmatpush2.xpose.msra.mxu0 0.0
      %493 = vmatprep.subr.mxu0 0.0
      %494 = vmatpush2.xpose.msra.mxu0 0.0
      %495 = vmatprep.subr.mxu0 0.0
      %496 = vmatpush2.xpose.msra.mxu0 0.0
      %497 = vmatprep.subr.mxu0 0.0
      %498 = vmatpush2.xpose.msra.mxu0 0.0
      %499 = vmatprep.subr.mxu0 0.0
      %500 = vmatpush2.xpose.msra.mxu0 0.0
      %501 = vmatprep.mubr.f32.mxu0 0.0
      %502 = vmatmul.mubr.f32.gmra.mxu0 %v432
      %v503 = vpop.f32.mrf.mxu0
      %v504 = vadd.f32 0.0, %v503
      %v505 = vpop.f32.mrf.mxu0
      %506 = vdwg.mxu0
      %vm507 = vcmask 23552
      %v509 = vsel %vm507, %v427, 0
      %v512 = vsel %vm507, %v429, 0
      %514 = vmatprep.subr.mxu0 0.0
      %515 = vmatpush1.xpose.msra.mxu0 0.0
      %516 = vmatprep.subr.mxu0 0.0
      %517 = vmatpush1.xpose.msra.mxu0 0.0
      %518 = vmatprep.subr.mxu0 0.0
      %519 = vmatpush1.xpose.msra.mxu0 0.0
      %520 = vmatprep.subr.mxu0 0.0
      %521 = vmatpush1.xpose.msra.mxu0 0.0
      %522 = vmatprep.subr.mxu0 0.0
      %523 = vmatpush1.xpose.msra.mxu0 0.0
      %524 = vmatprep.subr.mxu0 0.0
      %525 = vmatpush1.xpose.msra.mxu0 0.0
      %526 = vmatprep.subr.mxu0 0.0
      %527 = vmatpush1.xpose.msra.mxu0 0.0
      %528 = vmatprep.subr.mxu0 0.0
      %529 = vmatpush1.xpose.msra.mxu0 0.0
      %530 = vmatprep.subr.mxu0 0.0
      %531 = vmatpush1.xpose.msra.mxu0 0.0
      %532 = vmatprep.subr.mxu0 0.0
      %533 = vmatpush1.xpose.msra.mxu0 0.0
      %534 = vmatprep.subr.mxu0 0.0
      %535 = vmatpush1.xpose.msra.mxu0 0.0
      %536 = vmatprep.subr.mxu0 0.0
      %537 = vmatpush1.xpose.msra.mxu0 0.0
      %538 = vmatprep.subr.mxu0 0.0
      %539 = vmatpush1.xpose.msra.mxu0 0.0
      %540 = vmatprep.subr.mxu0 0.0
      %541 = vmatpush1.xpose.msra.mxu0 0.0
      %542 = vmatprep.subr.mxu0 0.0
      %543 = vmatpush1.xpose.msra.mxu0 0.0
      %544 = vmatprep.subr.mxu0 0.0
      %545 = vmatpush1.xpose.msra.mxu0 %v512
      %546 = vmatprep.subr.mxu0 0.0
      %547 = vmatpush2.xpose.msra.mxu0 0.0
      %548 = vmatprep.subr.mxu0 0.0
      %549 = vmatpush2.xpose.msra.mxu0 0.0
      %550 = vmatprep.subr.mxu0 0.0
      %551 = vmatpush2.xpose.msra.mxu0 0.0
      %552 = vmatprep.subr.mxu0 0.0
      %553 = vmatpush2.xpose.msra.mxu0 0.0
      %554 = vmatprep.subr.mxu0 0.0
      %555 = vmatpush2.xpose.msra.mxu0 0.0
      %556 = vmatprep.subr.mxu0 0.0
      %557 = vmatpush2.xpose.msra.mxu0 0.0
      %558 = vmatprep.subr.mxu0 0.0
      %559 = vmatpush2.xpose.msra.mxu0 0.0
      %560 = vmatprep.subr.mxu0 0.0
      %561 = vmatpush2.xpose.msra.mxu0 0.0
      %562 = vmatprep.subr.mxu0 0.0
      %563 = vmatpush2.xpose.msra.mxu0 0.0
      %564 = vmatprep.subr.mxu0 0.0
      %565 = vmatpush2.xpose.msra.mxu0 0.0
      %566 = vmatprep.subr.mxu0 0.0
      %567 = vmatpush2.xpose.msra.mxu0 0.0
      %568 = vmatprep.subr.mxu0 0.0
      %569 = vmatpush2.xpose.msra.mxu0 0.0
      %570 = vmatprep.subr.mxu0 0.0
      %571 = vmatpush2.xpose.msra.mxu0 0.0
      %572 = vmatprep.subr.mxu0 0.0
      %573 = vmatpush2.xpose.msra.mxu0 0.0
      %574 = vmatprep.subr.mxu0 0.0
      %575 = vmatpush2.xpose.msra.mxu0 0.0
      %576 = vmatprep.subr.mxu0 0.0
      %577 = vmatpush2.xpose.msra.mxu0 0.0
      %578 = vmatprep.mubr.f32.mxu0 0.0
      %579 = vmatmul.mubr.f32.gmra.mxu0 %v509
      %v580 = vpop.f32.mrf.mxu0
      %v581 = vadd.f32 0.0, %v580
      %v582 = vpop.f32.mrf.mxu0
      %583 = vdwg.mxu0
      %v584 = vmul.f32 %v406, %v504
      %v585 = vsub.f32 %v584, %v581
      %v586 = vsel %vm67, %v585, -inf
      %587 = vmax.xlane.f32.xlu0 %v586
      %v588 = vpop.xlane.xlu0 %587
      %v589 = vsub.f32 %v585, %v588
      %v590 = vmul.f32 %v589, 1.442695
      %v591 = vpow.pop %v590
      %v592 = vsel %vm67, %v591, 0.0
      %593 = vadd.xlane.f32.xlu0 %v592
      %v594 = vpop.xlane.xlu0 %593
      %v595 = vlog2.pop %v594
      %v596 = vmul.f32 %v595, 0.6931472
      %v597 = vadd.f32 %v588, %v596
      %v598 = vmul.f32 %v266, %v260
      %599 = vadd.xlane.f32.xlu0 %v598
      %v600 = vpop.xlane.xlu0 %599
      %v601 = vsub.f32 %v600, %v310
      %v602 = vmul.f32 %v601, %v328
      %v603 = vsub.f32 %v600, %v316
      %v604 = vmul.f32 %v603, %v338
      %v605 = vadd.f32 %v602, %v604
      %v606 = vmul.f32 %v413, %v605
      %v607 = vstv %s247
      %v608 = vadd.f32 %v606, %v607
      %v609 = vsub.f32 %v597, %v608
      %v610 = vrot.slane %v609, 4
      %v611 = vadd.f32 %v609, %v610
      %v612 = vrot.slane %v611, 2
      %v613 = vadd.f32 %v611, %v612
      %v614 = vrot.slane %v613, 1
      %v615 = vadd.f32 %v613, %v614
      %v616 = vmul.f32 %v615, 0.125
      %vm617 = vcmask 0
      %618 = vst.msk [vmem:[#allocation11] sm:$0x1] %vm617, %v616
    $region33: #{tpu_custom_call.1} parent=1 // pred_fallthru
      _
    // Predicated region
    $region34: #{tpu_custom_call.1} parent=1 // pred_check
      _
    $region35: #{tpu_custom_call.1} parent=1 // pred_check_branch
      %620 = sbr.rel (0) target = $region37
    $region36: #{tpu_custom_call.1} parent=1 // pred_region
      %s622 = ssub.s32 16, 16
      %623 = vsyncadd [#allocation6], %s622
      %s625 = sshll.u32 [#allocation11], 4
      %s626 = int_to_ptr.vmem [resolvable:$true] %s625
      %628 = dma.vmem_to_hbm [thread:$0]  %s626, 16, %s3, [#allocation6]
    $region37: #{tpu_custom_call.1} parent=1 // pred_fallthru
      _
    // Predicated region
    $region38: #{tpu_custom_call.1} parent=1 // pred_check
      _
    $region39: #{tpu_custom_call.1} parent=1 // pred_check_branch
      %630 = sbr.rel (0) target = $region41
    $region40: #{tpu_custom_call.1} parent=1 // pred_region
      %631 = dma.done [#allocation6], 16
    $region41: #{tpu_custom_call.1} parent=1 // pred_fallthru
      _
    %632 = vsyncpa [#allocation5], 1
    %633 = vsyncpa [#allocation10], 1
    %634 = vsyncpa [#allocation6], 1
    %635 = vsyncpa [#allocation7], 1

</llo_original>
